<compile_context>
chip_gen: v6e
topology: v6e:2x2x1
jax: 0.10.0
libtpu: 0.0.40
codegen_flags: <defaults>
</compile_context>

<pallas_src>
import jax
import jax.numpy as jnp
from jax.experimental import pallas as pl
from jax.experimental.pallas import tpu as pltpu


def _linop_row_stream_kernel(x_ref, k_ref, o_ref):
    """One grid step: o[:, j-tile] = X @ K[j-tile, :]^T  (single MXU dot).

    x_ref: (Np, D)  resident input block (bf16)
    k_ref: (tn, D)  streamed K row block (bf16)
    o_ref: (Np, tn) output column tile (f32)
    """
    o_ref[...] = jax.lax.dot_general(
        x_ref[...], k_ref[...],
        dimension_numbers=(((1,), (1,)), ((), ())),   # contract feature axes -> X @ K^T
        preferred_element_type=jnp.float32,
    ).astype(o_ref.dtype)


def _pick_row_block(D, itemsize, *, target_bytes=8 << 20):
    """Largest row-block size tn that: divides D, is a multiple of 128 (lane-
    dense output stores), keeps the streamed K block under `target_bytes`, and
    (when possible) leaves >= 2 grid steps so v7x can split across its TCs."""
    cands = [t for t in range(128, D + 1, 128) if D % t == 0]
    if not cands:
        return D  # block == full array dims; still legal for BlockSpec
    max_rows = max(target_bytes // (D * itemsize), 128)
    multi = [t for t in cands if t <= max_rows and (D // t) >= 2]
    if multi:
        return max(multi)
    fit = [t for t in cands if t <= max_rows]
    return max(fit) if fit else min(cands)


def linop_forward(x_nchw, K, *, tn=None, compute_dtype=jnp.bfloat16):
    """Apply the linear operator K to x (x -> Kx), batched over N.

    x_nchw : [N, C, H, W] float32
    K      : [D, D] float32 with D = C*H*W
    returns: [N, C, H, W] float32
    """
    N, C, H, W = x_nchw.shape
    D = C * H * W
    assert K.shape == (D, D)

    out_dtype = x_nchw.dtype
    itemsize = jnp.dtype(compute_dtype).itemsize

    if tn is None:
        tn = _pick_row_block(D, itemsize)
    assert D % tn == 0, "row block must divide D (no ragged-D padding path)"

    # Pad batch to a sublane group so output stores are unmasked full vst.
    Np = max(8, ((N + 7) // 8) * 8)
    x_flat = x_nchw.reshape(N, D)
    if Np != N:
        x_flat = jnp.pad(x_flat, ((0, Np - N), (0, 0)))

    # Narrow-precision streaming (f32 accumulation kept inside the kernel).
    x_lo = x_flat.astype(compute_dtype)
    K_lo = K.astype(compute_dtype)

    n_steps = D // tn

    # VMEM budget: double-buffered K block + resident X + double-buffered out.
    vmem_need = 2 * tn * D * itemsize + Np * D * itemsize + 2 * Np * tn * 4
    vmem_limit = int(min(max(2 * vmem_need, 16 << 20), 48 << 20))

    cost = pl.CostEstimate(
        flops=2 * Np * D * D,
        transcendentals=0,
        bytes_accessed=D * D * itemsize + Np * D * itemsize + Np * D * 4,
    )

    y_flat = pl.pallas_call(
        _linop_row_stream_kernel,
        out_shape=jax.ShapeDtypeStruct((Np, D), out_dtype),
        grid_spec=pltpu.PrefetchScalarGridSpec(
            num_scalar_prefetch=0,
            grid=(n_steps,),                                   # K row-block stream
            in_specs=[
                pl.BlockSpec((Np, D), lambda j: (0, 0)),       # X: resident, never re-fetched
                pl.BlockSpec((tn, D), lambda j: (j, 0)),       # K: j-th contiguous row block
            ],
            out_specs=pl.BlockSpec((Np, tn), lambda j: (0, j)),
        ),
        compiler_params=pltpu.CompilerParams(
            dimension_semantics=("parallel",),                 # independent output tiles
            vmem_limit_bytes=vmem_limit,
        ),
        cost_estimate=cost,
    )(x_lo, K_lo)

    return y_flat[:N].reshape(N, C, H, W)


if __name__ == "__main__":
    # Small shapes consistent with an image-domain LinOp: N=2, C=4, H=W=16.
    N, C, H, W = 2, 4, 16, 16
    D = C * H * W

    key = jax.random.PRNGKey(0)
    kx, kw = jax.random.split(key)
    x = jax.random.normal(kx, (N, C, H, W), dtype=jnp.float32)
    # Deterministic operator matrix K (the "weights" of this synthetic LinOp).
    K = jax.random.normal(kw, (D, D), dtype=jnp.float32) / jnp.sqrt(D)

    y = linop_forward(x, K)
    jax.block_until_ready(y)

    # Pure-JAX f32 reference of the linear map semantics (kernel streams K in
    # bf16 with f32 accumulation, hence the looser tolerance).
    y_ref = (x.reshape(N, D) @ K.T).reshape(N, C, H, W)
    assert y.shape == (N, C, H, W)
    assert jnp.allclose(y, y_ref, atol=5e-2, rtol=5e-2)

    print("KERNEL_OK")
</pallas_src>

<mosaic_0001>
module attributes {stable_mosaic.version = 11 : i64} {
  func.func @_linop_row_stream_kernel(%arg0: i32, %arg1: memref<8x1024xbf16, #tpu.memory_space<vmem>>, %arg2: memref<512x1024xbf16, #tpu.memory_space<vmem>>, %arg3: memref<8x512xf32, #tpu.memory_space<vmem>>) attributes {dimension_semantics = [#tpu.dimension_semantics<parallel>], iteration_bounds = array<i64: 2>, scalar_prefetch = 0 : i64, scratch_operands = 0 : i64, tpu.core_type = #tpu.core_type<tc>, window_params = [{pipeline_mode = #tpu.pipeline_mode<synchronous>, transform_indices = @transform_0, window_bounds = array<i64: 8, 1024>}, {transform_indices = @transform_1, window_bounds = array<i64: 512, 1024>}, {transform_indices = @transform_2, window_bounds = array<i64: 8, 512>}]} {
    %c0 = arith.constant 0 : index
    %c0_0 = arith.constant 0 : index
    %0 = vector.load %arg1[%c0, %c0_0] : memref<8x1024xbf16, #tpu.memory_space<vmem>>, vector<8x1024xbf16>
    %c0_1 = arith.constant 0 : index
    %c0_2 = arith.constant 0 : index
    %1 = vector.load %arg2[%c0_1, %c0_2] : memref<512x1024xbf16, #tpu.memory_space<vmem>>, vector<512x1024xbf16>
    %cst = arith.constant dense<0.000000e+00> : vector<8x512xf32>
    %2 = tpu.matmul %0, %1, %cst {dimension_numbers = #tpu.dot_dimension_numbers<[1], [1], [0], [0], [0, 0, 1, 0], [], []>} : vector<8x1024xbf16>, vector<512x1024xbf16>, vector<8x512xf32> -> vector<8x512xf32>
    %c0_3 = arith.constant 0 : index
    %c0_4 = arith.constant 0 : index
    %3 = vector.load %arg3[%c0_3, %c0_4] : memref<8x512xf32, #tpu.memory_space<vmem>>, vector<8x512xf32>
    tpu.vector_store %arg3[%c0_3, %c0_4], %2 {strides = array<i32>} : memref<8x512xf32, #tpu.memory_space<vmem>>, vector<8x512xf32>,
    return
  }
  func.func @transform_0(%arg0: i32) -> (i32, i32) {
    %c0_i32 = arith.constant 0 : i32
    %c0_i32_0 = arith.constant 0 : i32
    %c0_i32_1 = arith.constant 0 : i32
    return %c0_i32, %c0_i32_0 : i32, i32
  }
  func.func @transform_1(%arg0: i32) -> (i32, i32) {
    %c0_i32 = arith.constant 0 : i32
    %c0_i32_0 = arith.constant 0 : i32
    return %arg0, %c0_i32 : i32, i32
  }
  func.func @transform_2(%arg0: i32) -> (i32, i32) {
    %c0_i32 = arith.constant 0 : i32
    %c0_i32_0 = arith.constant 0 : i32
    return %c0_i32, %arg0 : i32, i32
  }
}

</mosaic_0001>

<llo_original>
// kernel: tpu_custom_call.1
$region0: #{tpu_custom_call.1}
  #allocation0 [shape = 'u32[]', space=smem, size = 0x4, offset = 0x4, fixed_abs, tag = 'smem constant byte address 0x4 - core index']
  #allocation1 [shape = 'u32[144,128]{1,0:T(1,128)}', space=vmem, size = 0x12000, scoped, tag = 'internal scratch']
  %s0 = inlined_call_operand.hbm [shape: bf16[8,1024], index: 0, kind: input, shape index: {}]
  %s1 = inlined_call_operand.hbm [shape: bf16[1024,1024], index: 1, kind: input, shape index: {}]
  %s2 = inlined_call_operand.hbm [shape: f32[8,1024], index: 2, kind: output, shape index: {}]
  %s3 = sld [smem:[#allocation0]]
  $region49: #{tpu_custom_call.1} parent=0
    _
  %s5 = ssub.s32 1, %s3
  %s6 = scalar_select 0, %s5, %s3
  $region1: #{tpu_custom_call.1} parent=0
    #allocation2 [shape = 'u8[16384]{0}', space=vmem, size = 0x4000, scoped, tag = 'input window, operand 0, single buffered']
    #allocation3 [shape = 's32[2]{0}', space=sflag, size = 0x8, scoped, tag = 'scoped memory for tpu_custom_call.1']
    #allocation4 [shape = 's32[2]{0}', space=sflag, size = 0x8, scoped, tag = 'scoped memory for tpu_custom_call.1']
    #allocation5 [shape = 'u8[2097152]{0}', space=vmem, size = 0x200000, scoped, tag = 'input window, operand 1']
    #allocation6 [shape = 's32[2]{0}', space=sflag, size = 0x8, scoped, tag = 'scoped memory for tpu_custom_call.1']
    #allocation7 [shape = 'u8[32768]{0}', space=vmem, size = 0x8000, scoped, tag = 'output window, operand 0']
    %7 = vsyncpa [#allocation3], 0
    %8 = vsyncpa [#allocation6], 0
    %s9 = scalar_lea.sflag [#allocation6], 1
    %10 = vsyncpa %s9, 0
    %11 = vsyncpa [#allocation4], 0
    %s12 = scalar_lea.sflag [#allocation4], 1
    %13 = vsyncpa %s12, 0
    loop: start=0, step=1, limit=4
    $region2: #{tpu_custom_call.1} parent=1 // loop_pre_header
      _
    $region3: #{tpu_custom_call.1} parent=1 // loop_header
      %s15 = sphi 0, %s19
      %p16 = scmp.ge.s32.totalorder %s15, 4
      %s23 = sphi 0, %s23
      %s25 = sphi 0, %s23
      %s26 = sphi 0, %s25
      %s40 = sphi 0, %s26
      %s46 = sphi 0, %s48
      %s49 = sphi 0, %s46
      %s50 = sphi 0, %s49
      %s66 = sphi 0, %s50
      %s72 = sphi 0, %s74
      %s75 = sphi 0, %s72
      %s76 = sphi 0, %s75
      %s92 = sphi 0, %s76
    $region4: #{tpu_custom_call.1} parent=1 // loop_header_branch
      %18 = sbr.rel (%p16) target = $region8
    $region5: #{tpu_custom_call.1} parent=1 // loop_body
      %s20 = ssub.s32 %s15, 1
      %s21 = ssub.s32 %s15, 2
      %s22 = sadd.s32 %s15, 1
      %s24 = sadd.s32 %s23, 1
      %p27 = scmp.eq.s32.totalorder %s15, 1
      %p28 = scmp.ne.s32.totalorder %s23, %s25
      %p29 = scmp.eq.s32.totalorder %s15, 0
      %p30 = por %p28, %p29
      %p31 = scmp.ne.s32.totalorder %s23, %s25
      %p32 = scmp.eq.s32.totalorder %s20, 1
      %p33 = por %p31, %p32
      %p34 = scmp.ne.s32.totalorder %s25, %s26
      %p35 = scmp.eq.s32.totalorder %s20, 0
      %p36 = por %p34, %p35
      %p37 = scmp.ne.s32.totalorder %s25, %s26
      %p38 = scmp.eq.s32.totalorder %s21, 1
      %p39 = por %p37, %p38
      %p41 = scmp.ne.s32.totalorder %s26, %s40
      %p42 = scmp.eq.s32.totalorder %s21, 0
      %p43 = por %p41, %p42
      %s44 = ssub.s32 %s15, %s22
      %p45 = scmp.eq.s32.totalorder %s44, 0
      %s47 = sadd.s32 %s46, 1
      %s48 = scalar_select %p45, %s46, %s47
      %p51 = pneg %p45
      %p52 = scmp.eq.s32.totalorder %s15, 1
      %p53 = por %p51, %p52
      %p54 = scmp.ne.s32.totalorder %s46, %s49
      %p55 = scmp.eq.s32.totalorder %s15, 0
      %p56 = por %p54, %p55
      %p57 = scmp.ne.s32.totalorder %s46, %s49
      %p58 = scmp.eq.s32.totalorder %s20, 1
      %p59 = por %p57, %p58
      %p60 = scmp.ne.s32.totalorder %s49, %s50
      %p61 = scmp.eq.s32.totalorder %s20, 0
      %p62 = por %p60, %p61
      %p63 = scmp.ne.s32.totalorder %s49, %s50
      %p64 = scmp.eq.s32.totalorder %s21, 1
      %p65 = por %p63, %p64
      %p67 = scmp.ne.s32.totalorder %s50, %s66
      %p68 = scmp.eq.s32.totalorder %s21, 0
      %p69 = por %p67, %p68
      %s70 = ssub.s32 %s15, %s22
      %p71 = scmp.eq.s32.totalorder %s70, 0
      %s73 = sadd.s32 %s72, 1
      %s74 = scalar_select %p71, %s72, %s73
      %p77 = pneg %p71
      %p78 = scmp.eq.s32.totalorder %s15, 1
      %p79 = por %p77, %p78
      %p80 = scmp.ne.s32.totalorder %s72, %s75
      %p81 = scmp.eq.s32.totalorder %s15, 0
      %p82 = por %p80, %p81
      %p83 = scmp.ne.s32.totalorder %s72, %s75
      %p84 = scmp.eq.s32.totalorder %s20, 1
      %p85 = por %p83, %p84
      %p86 = scmp.ne.s32.totalorder %s75, %s76
      %p87 = scmp.eq.s32.totalorder %s20, 0
      %p88 = por %p86, %p87
      %p89 = scmp.ne.s32.totalorder %s75, %s76
      %p90 = scmp.eq.s32.totalorder %s21, 1
      %p91 = por %p89, %p90
      %p93 = scmp.ne.s32.totalorder %s76, %s92
      %p94 = scmp.eq.s32.totalorder %s21, 0
      %p95 = por %p93, %p94
      %p96 = scmp.le.s32.totalorder 1, %s15
      %p97 = scmp.lt.s32.totalorder %s15, 3
      %p98 = pnand %p96, %p97
      %p99 = pneg %p98
      // Predicated region
      $region9: #{tpu_custom_call.1} parent=5 // pred_check
        _
      $region10: #{tpu_custom_call.1} parent=5 // pred_check_branch
        %101 = sbr.rel (%p98) target = $region12
      $region11: #{tpu_custom_call.1} parent=5 // pred_region
        %s102 = ssub.s32 %s15, 1
        // Predicated region
        $region13: #{tpu_custom_call.1} parent=11 // pred_check
          %p103 = pneg %p36
        $region14: #{tpu_custom_call.1} parent=11 // pred_check_branch
          %105 = sbr.rel (%p103) target = $region16
        $region15: #{tpu_custom_call.1} parent=11 // pred_region
          %s107 = ssub.s32 512, 512
          %108 = vsyncadd [#allocation3], %s107
          %s110 = sshll.u32 [#allocation2], 4
          %s111 = int_to_ptr.vmem [resolvable:$true] %s110
          %113 = dma.hbm_to_vmem [thread:$0]  %s0, 512, %s111, [#allocation3]
        $region16: #{tpu_custom_call.1} parent=11 // pred_fallthru
          _
      $region12: #{tpu_custom_call.1} parent=5 // pred_fallthru
        _
      %p114 = scmp.lt.s32.totalorder %s15, 2
      // Predicated region
      $region17: #{tpu_custom_call.1} parent=5 // pred_check
        %p115 = pneg %p114
      $region18: #{tpu_custom_call.1} parent=5 // pred_check_branch
        %117 = sbr.rel (%p115) target = $region20
      $region19: #{tpu_custom_call.1} parent=5 // pred_region
        // Predicated region
        $region21: #{tpu_custom_call.1} parent=19 // pred_check
          %p118 = pneg %p56
        $region22: #{tpu_custom_call.1} parent=19 // pred_check_branch
          %120 = sbr.rel (%p118) target = $region24
        $region23: #{tpu_custom_call.1} parent=19 // pred_region
          %s121 = sand.u32 %s46, 1
          %s122 = scalar_lea.sflag [#allocation6], %s121
          %s123 = sand.u32 %s46, 1
          %s124 = smul.addr %s123, 2048
          %s125 = scalar_lea.vmem [#allocation5], %s124
          %s126 = smul.u32 64, %s15
          %s128 = ssub.s32 32768, 32768
          %129 = vsyncadd %s122, %s128
          %s130 = smul.addr %s126, 8
          %s131 = smul.addr %s130, 64
          %s132 = scalar_lea.hbm %s1, %s131
          %s133 = sshll.u32 %s125, 4
          %s134 = int_to_ptr.vmem [resolvable:$true] %s133
          %139 = dma.hbm_to_vmem [thread:$0]  %s132, 32768, %s134, %s122, 512, 512, 32
        $region24: #{tpu_custom_call.1} parent=19 // pred_fallthru
          _
      $region20: #{tpu_custom_call.1} parent=5 // pred_fallthru
        _
      %p140 = scmp.le.s32.totalorder 1, %s15
      %p141 = scmp.lt.s32.totalorder %s15, 3
      %p142 = pnand %p140, %p141
      %p143 = pneg %p142
      // Predicated region
      $region25: #{tpu_custom_call.1} parent=5 // pred_check
        _
      $region26: #{tpu_custom_call.1} parent=5 // pred_check_branch
        %145 = sbr.rel (%p142) target = $region28
      $region27: #{tpu_custom_call.1} parent=5 // pred_region
        %s146 = ssub.s32 %s15, 1
        // Predicated region
        $region29: #{tpu_custom_call.1} parent=27 // pred_check
          %p147 = pneg %p36
        $region30: #{tpu_custom_call.1} parent=27 // pred_check_branch
          %149 = sbr.rel (%p147) target = $region32
        $region31: #{tpu_custom_call.1} parent=27 // pred_region
          %150 = dma.done [#allocation3], 512
        $region32: #{tpu_custom_call.1} parent=27 // pred_fallthru
          _
        %s151 = sand.u32 %s49, 1
        %s152 = scalar_lea.sflag [#allocation6], %s151
        %s153 = sand.u32 %s49, 1
        %s154 = smul.addr %s153, 2048
        %s155 = scalar_lea.vmem [#allocation5], %s154
        // Predicated region
        $region33: #{tpu_custom_call.1} parent=27 // pred_check
          %p156 = pneg %p62
        $region34: #{tpu_custom_call.1} parent=27 // pred_check_branch
          %158 = sbr.rel (%p156) target = $region36
        $region35: #{tpu_custom_call.1} parent=27 // pred_region
          %159 = dma.done %s152, 32768
        $region36: #{tpu_custom_call.1} parent=27 // pred_fallthru
          _
        %p160 = pneg %p36
        %p161 = pneg %p33
        %s162 = sand.u32 %s49, 1
        %s163 = scalar_lea.sflag [#allocation6], %s162
        %s164 = sand.u32 %s49, 1
        %s165 = smul.addr %s164, 2048
        %s166 = scalar_lea.vmem [#allocation5], %s165
        %p167 = pneg %p62
        %p168 = pneg %p59
        %p169 = pneg %p88
        %p170 = pneg %p85
        %s171 = sand.u32 %s75, 1
        %s172 = scalar_lea.sflag [#allocation4], %s171
        %s173 = sand.u32 %s75, 1
        %s174 = smul.addr %s173, 32
        %s175 = scalar_lea.vmem [#allocation7], %s174
        %s176 = smul.u32 64, %s20
        %s177 = smul.u32 4, %s20
        %v178 = vld [vmem:[#allocation2] sm:$0xff]
        %v179 = vld [vmem:[#allocation2 + $0x8] sm:$0xff]
        %v180 = vld [vmem:[#allocation2 + $0x10] sm:$0xff]
        %v181 = vld [vmem:[#allocation2 + $0x18] sm:$0xff]
        %v182 = vld [vmem:[%s155] sm:$0xff]
        %v183 = vld [vmem:[%s155 + $0x8] sm:$0xff]
        %v184 = vld [vmem:[%s155 + $0x10] sm:$0xff]
        %v185 = vld [vmem:[%s155 + $0x18] sm:$0xff]
        %v186 = vld [vmem:[%s155 + $0x20] sm:$0xff]
        %v187 = vld [vmem:[%s155 + $0x28] sm:$0xff]
        %v188 = vld [vmem:[%s155 + $0x30] sm:$0xff]
        %v189 = vld [vmem:[%s155 + $0x38] sm:$0xff]
        %v190 = vld [vmem:[%s155 + $0x40] sm:$0xff]
        %v191 = vld [vmem:[%s155 + $0x48] sm:$0xff]
        %v192 = vld [vmem:[%s155 + $0x50] sm:$0xff]
        %v193 = vld [vmem:[%s155 + $0x58] sm:$0xff]
        %v194 = vld [vmem:[%s155 + $0x60] sm:$0xff]
        %v195 = vld [vmem:[%s155 + $0x68] sm:$0xff]
        %v196 = vld [vmem:[%s155 + $0x70] sm:$0xff]
        %v197 = vld [vmem:[%s155 + $0x78] sm:$0xff]
        %v198 = vld [vmem:[%s155 + $0x80] sm:$0xff]
        %v199 = vld [vmem:[%s155 + $0x88] sm:$0xff]
        %v200 = vld [vmem:[%s155 + $0x90] sm:$0xff]
        %v201 = vld [vmem:[%s155 + $0x98] sm:$0xff]
        %v202 = vld [vmem:[%s155 + $0xa0] sm:$0xff]
        %v203 = vld [vmem:[%s155 + $0xa8] sm:$0xff]
        %v204 = vld [vmem:[%s155 + $0xb0] sm:$0xff]
        %v205 = vld [vmem:[%s155 + $0xb8] sm:$0xff]
        %v206 = vld [vmem:[%s155 + $0xc0] sm:$0xff]
        %v207 = vld [vmem:[%s155 + $0xc8] sm:$0xff]
        %v208 = vld [vmem:[%s155 + $0xd0] sm:$0xff]
        %v209 = vld [vmem:[%s155 + $0xd8] sm:$0xff]
        %v210 = vld [vmem:[%s155 + $0xe0] sm:$0xff]
        %v211 = vld [vmem:[%s155 + $0xe8] sm:$0xff]
        %v212 = vld [vmem:[%s155 + $0xf0] sm:$0xff]
        %v213 = vld [vmem:[%s155 + $0xf8] sm:$0xff]
        %v214 = vld [vmem:[%s155 + $0x100] sm:$0xff]
        %v215 = vld [vmem:[%s155 + $0x108] sm:$0xff]
        %v216 = vld [vmem:[%s155 + $0x110] sm:$0xff]
        %v217 = vld [vmem:[%s155 + $0x118] sm:$0xff]
        %v218 = vld [vmem:[%s155 + $0x120] sm:$0xff]
        %v219 = vld [vmem:[%s155 + $0x128] sm:$0xff]
        %v220 = vld [vmem:[%s155 + $0x130] sm:$0xff]
        %v221 = vld [vmem:[%s155 + $0x138] sm:$0xff]
        %v222 = vld [vmem:[%s155 + $0x140] sm:$0xff]
        %v223 = vld [vmem:[%s155 + $0x148] sm:$0xff]
        %v224 = vld [vmem:[%s155 + $0x150] sm:$0xff]
        %v225 = vld [vmem:[%s155 + $0x158] sm:$0xff]
        %v226 = vld [vmem:[%s155 + $0x160] sm:$0xff]
        %v227 = vld [vmem:[%s155 + $0x168] sm:$0xff]
        %v228 = vld [vmem:[%s155 + $0x170] sm:$0xff]
        %v229 = vld [vmem:[%s155 + $0x178] sm:$0xff]
        %v230 = vld [vmem:[%s155 + $0x180] sm:$0xff]
        %v231 = vld [vmem:[%s155 + $0x188] sm:$0xff]
        %v232 = vld [vmem:[%s155 + $0x190] sm:$0xff]
        %v233 = vld [vmem:[%s155 + $0x198] sm:$0xff]
        %v234 = vld [vmem:[%s155 + $0x1a0] sm:$0xff]
        %v235 = vld [vmem:[%s155 + $0x1a8] sm:$0xff]
        %v236 = vld [vmem:[%s155 + $0x1b0] sm:$0xff]
        %v237 = vld [vmem:[%s155 + $0x1b8] sm:$0xff]
        %v238 = vld [vmem:[%s155 + $0x1c0] sm:$0xff]
        %v239 = vld [vmem:[%s155 + $0x1c8] sm:$0xff]
        %v240 = vld [vmem:[%s155 + $0x1d0] sm:$0xff]
        %v241 = vld [vmem:[%s155 + $0x1d8] sm:$0xff]
        %v242 = vld [vmem:[%s155 + $0x1e0] sm:$0xff]
        %v243 = vld [vmem:[%s155 + $0x1e8] sm:$0xff]
        %v244 = vld [vmem:[%s155 + $0x1f0] sm:$0xff]
        %v245 = vld [vmem:[%s155 + $0x1f8] sm:$0xff]
        %v246 = vld [vmem:[%s155 + $0x200] sm:$0xff]
        %v247 = vld [vmem:[%s155 + $0x208] sm:$0xff]
        %v248 = vld [vmem:[%s155 + $0x210] sm:$0xff]
        %v249 = vld [vmem:[%s155 + $0x218] sm:$0xff]
        %v250 = vld [vmem:[%s155 + $0x220] sm:$0xff]
        %v251 = vld [vmem:[%s155 + $0x228] sm:$0xff]
        %v252 = vld [vmem:[%s155 + $0x230] sm:$0xff]
        %v253 = vld [vmem:[%s155 + $0x238] sm:$0xff]
        %v254 = vld [vmem:[%s155 + $0x240] sm:$0xff]
        %v255 = vld [vmem:[%s155 + $0x248] sm:$0xff]
        %v256 = vld [vmem:[%s155 + $0x250] sm:$0xff]
        %v257 = vld [vmem:[%s155 + $0x258] sm:$0xff]
        %v258 = vld [vmem:[%s155 + $0x260] sm:$0xff]
        %v259 = vld [vmem:[%s155 + $0x268] sm:$0xff]
        %v260 = vld [vmem:[%s155 + $0x270] sm:$0xff]
        %v261 = vld [vmem:[%s155 + $0x278] sm:$0xff]
        %v262 = vld [vmem:[%s155 + $0x280] sm:$0xff]
        %v263 = vld [vmem:[%s155 + $0x288] sm:$0xff]
        %v264 = vld [vmem:[%s155 + $0x290] sm:$0xff]
        %v265 = vld [vmem:[%s155 + $0x298] sm:$0xff]
        %v266 = vld [vmem:[%s155 + $0x2a0] sm:$0xff]
        %v267 = vld [vmem:[%s155 + $0x2a8] sm:$0xff]
        %v268 = vld [vmem:[%s155 + $0x2b0] sm:$0xff]
        %v269 = vld [vmem:[%s155 + $0x2b8] sm:$0xff]
        %v270 = vld [vmem:[%s155 + $0x2c0] sm:$0xff]
        %v271 = vld [vmem:[%s155 + $0x2c8] sm:$0xff]
        %v272 = vld [vmem:[%s155 + $0x2d0] sm:$0xff]
        %v273 = vld [vmem:[%s155 + $0x2d8] sm:$0xff]
        %v274 = vld [vmem:[%s155 + $0x2e0] sm:$0xff]
        %v275 = vld [vmem:[%s155 + $0x2e8] sm:$0xff]
        %v276 = vld [vmem:[%s155 + $0x2f0] sm:$0xff]
        %v277 = vld [vmem:[%s155 + $0x2f8] sm:$0xff]
        %v278 = vld [vmem:[%s155 + $0x300] sm:$0xff]
        %v279 = vld [vmem:[%s155 + $0x308] sm:$0xff]
        %v280 = vld [vmem:[%s155 + $0x310] sm:$0xff]
        %v281 = vld [vmem:[%s155 + $0x318] sm:$0xff]
        %v282 = vld [vmem:[%s155 + $0x320] sm:$0xff]
        %v283 = vld [vmem:[%s155 + $0x328] sm:$0xff]
        %v284 = vld [vmem:[%s155 + $0x330] sm:$0xff]
        %v285 = vld [vmem:[%s155 + $0x338] sm:$0xff]
        %v286 = vld [vmem:[%s155 + $0x340] sm:$0xff]
        %v287 = vld [vmem:[%s155 + $0x348] sm:$0xff]
        %v288 = vld [vmem:[%s155 + $0x350] sm:$0xff]
        %v289 = vld [vmem:[%s155 + $0x358] sm:$0xff]
        %v290 = vld [vmem:[%s155 + $0x360] sm:$0xff]
        %v291 = vld [vmem:[%s155 + $0x368] sm:$0xff]
        %v292 = vld [vmem:[%s155 + $0x370] sm:$0xff]
        %v293 = vld [vmem:[%s155 + $0x378] sm:$0xff]
        %v294 = vld [vmem:[%s155 + $0x380] sm:$0xff]
        %v295 = vld [vmem:[%s155 + $0x388] sm:$0xff]
        %v296 = vld [vmem:[%s155 + $0x390] sm:$0xff]
        %v297 = vld [vmem:[%s155 + $0x398] sm:$0xff]
        %v298 = vld [vmem:[%s155 + $0x3a0] sm:$0xff]
        %v299 = vld [vmem:[%s155 + $0x3a8] sm:$0xff]
        %v300 = vld [vmem:[%s155 + $0x3b0] sm:$0xff]
        %v301 = vld [vmem:[%s155 + $0x3b8] sm:$0xff]
        %v302 = vld [vmem:[%s155 + $0x3c0] sm:$0xff]
        %v303 = vld [vmem:[%s155 + $0x3c8] sm:$0xff]
        %v304 = vld [vmem:[%s155 + $0x3d0] sm:$0xff]
        %v305 = vld [vmem:[%s155 + $0x3d8] sm:$0xff]
        %v306 = vld [vmem:[%s155 + $0x3e0] sm:$0xff]
        %v307 = vld [vmem:[%s155 + $0x3e8] sm:$0xff]
        %v308 = vld [vmem:[%s155 + $0x3f0] sm:$0xff]
        %v309 = vld [vmem:[%s155 + $0x3f8] sm:$0xff]
        %v310 = vld [vmem:[%s155 + $0x400] sm:$0xff]
        %v311 = vld [vmem:[%s155 + $0x408] sm:$0xff]
        %v312 = vld [vmem:[%s155 + $0x410] sm:$0xff]
        %v313 = vld [vmem:[%s155 + $0x418] sm:$0xff]
        %v314 = vld [vmem:[%s155 + $0x420] sm:$0xff]
        %v315 = vld [vmem:[%s155 + $0x428] sm:$0xff]
        %v316 = vld [vmem:[%s155 + $0x430] sm:$0xff]
        %v317 = vld [vmem:[%s155 + $0x438] sm:$0xff]
        %v318 = vld [vmem:[%s155 + $0x440] sm:$0xff]
        %v319 = vld [vmem:[%s155 + $0x448] sm:$0xff]
        %v320 = vld [vmem:[%s155 + $0x450] sm:$0xff]
        %v321 = vld [vmem:[%s155 + $0x458] sm:$0xff]
        %v322 = vld [vmem:[%s155 + $0x460] sm:$0xff]
        %v323 = vld [vmem:[%s155 + $0x468] sm:$0xff]
        %v324 = vld [vmem:[%s155 + $0x470] sm:$0xff]
        %v325 = vld [vmem:[%s155 + $0x478] sm:$0xff]
        %v326 = vld [vmem:[%s155 + $0x480] sm:$0xff]
        %v327 = vld [vmem:[%s155 + $0x488] sm:$0xff]
        %v328 = vld [vmem:[%s155 + $0x490] sm:$0xff]
        %v329 = vld [vmem:[%s155 + $0x498] sm:$0xff]
        %v330 = vld [vmem:[%s155 + $0x4a0] sm:$0xff]
        %v331 = vld [vmem:[%s155 + $0x4a8] sm:$0xff]
        %v332 = vld [vmem:[%s155 + $0x4b0] sm:$0xff]
        %v333 = vld [vmem:[%s155 + $0x4b8] sm:$0xff]
        %v334 = vld [vmem:[%s155 + $0x4c0] sm:$0xff]
        %v335 = vld [vmem:[%s155 + $0x4c8] sm:$0xff]
        %v336 = vld [vmem:[%s155 + $0x4d0] sm:$0xff]
        %v337 = vld [vmem:[%s155 + $0x4d8] sm:$0xff]
        %v338 = vld [vmem:[%s155 + $0x4e0] sm:$0xff]
        %v339 = vld [vmem:[%s155 + $0x4e8] sm:$0xff]
        %v340 = vld [vmem:[%s155 + $0x4f0] sm:$0xff]
        %v341 = vld [vmem:[%s155 + $0x4f8] sm:$0xff]
        %v342 = vld [vmem:[%s155 + $0x500] sm:$0xff]
        %v343 = vld [vmem:[%s155 + $0x508] sm:$0xff]
        %v344 = vld [vmem:[%s155 + $0x510] sm:$0xff]
        %v345 = vld [vmem:[%s155 + $0x518] sm:$0xff]
        %v346 = vld [vmem:[%s155 + $0x520] sm:$0xff]
        %v347 = vld [vmem:[%s155 + $0x528] sm:$0xff]
        %v348 = vld [vmem:[%s155 + $0x530] sm:$0xff]
        %v349 = vld [vmem:[%s155 + $0x538] sm:$0xff]
        %v350 = vld [vmem:[%s155 + $0x540] sm:$0xff]
        %v351 = vld [vmem:[%s155 + $0x548] sm:$0xff]
        %v352 = vld [vmem:[%s155 + $0x550] sm:$0xff]
        %v353 = vld [vmem:[%s155 + $0x558] sm:$0xff]
        %v354 = vld [vmem:[%s155 + $0x560] sm:$0xff]
        %v355 = vld [vmem:[%s155 + $0x568] sm:$0xff]
        %v356 = vld [vmem:[%s155 + $0x570] sm:$0xff]
        %v357 = vld [vmem:[%s155 + $0x578] sm:$0xff]
        %v358 = vld [vmem:[%s155 + $0x580] sm:$0xff]
        %v359 = vld [vmem:[%s155 + $0x588] sm:$0xff]
        %v360 = vld [vmem:[%s155 + $0x590] sm:$0xff]
        %v361 = vld [vmem:[%s155 + $0x598] sm:$0xff]
        %v362 = vld [vmem:[%s155 + $0x5a0] sm:$0xff]
        %v363 = vld [vmem:[%s155 + $0x5a8] sm:$0xff]
        %v364 = vld [vmem:[%s155 + $0x5b0] sm:$0xff]
        %v365 = vld [vmem:[%s155 + $0x5b8] sm:$0xff]
        %v366 = vld [vmem:[%s155 + $0x5c0] sm:$0xff]
        %v367 = vld [vmem:[%s155 + $0x5c8] sm:$0xff]
        %v368 = vld [vmem:[%s155 + $0x5d0] sm:$0xff]
        %v369 = vld [vmem:[%s155 + $0x5d8] sm:$0xff]
        %v370 = vld [vmem:[%s155 + $0x5e0] sm:$0xff]
        %v371 = vld [vmem:[%s155 + $0x5e8] sm:$0xff]
        %v372 = vld [vmem:[%s155 + $0x5f0] sm:$0xff]
        %v373 = vld [vmem:[%s155 + $0x5f8] sm:$0xff]
        %v374 = vld [vmem:[%s155 + $0x600] sm:$0xff]
        %v375 = vld [vmem:[%s155 + $0x608] sm:$0xff]
        %v376 = vld [vmem:[%s155 + $0x610] sm:$0xff]
        %v377 = vld [vmem:[%s155 + $0x618] sm:$0xff]
        %v378 = vld [vmem:[%s155 + $0x620] sm:$0xff]
        %v379 = vld [vmem:[%s155 + $0x628] sm:$0xff]
        %v380 = vld [vmem:[%s155 + $0x630] sm:$0xff]
        %v381 = vld [vmem:[%s155 + $0x638] sm:$0xff]
        %v382 = vld [vmem:[%s155 + $0x640] sm:$0xff]
        %v383 = vld [vmem:[%s155 + $0x648] sm:$0xff]
        %v384 = vld [vmem:[%s155 + $0x650] sm:$0xff]
        %v385 = vld [vmem:[%s155 + $0x658] sm:$0xff]
        %v386 = vld [vmem:[%s155 + $0x660] sm:$0xff]
        %v387 = vld [vmem:[%s155 + $0x668] sm:$0xff]
        %v388 = vld [vmem:[%s155 + $0x670] sm:$0xff]
        %v389 = vld [vmem:[%s155 + $0x678] sm:$0xff]
        %v390 = vld [vmem:[%s155 + $0x680] sm:$0xff]
        %v391 = vld [vmem:[%s155 + $0x688] sm:$0xff]
        %v392 = vld [vmem:[%s155 + $0x690] sm:$0xff]
        %v393 = vld [vmem:[%s155 + $0x698] sm:$0xff]
        %v394 = vld [vmem:[%s155 + $0x6a0] sm:$0xff]
        %v395 = vld [vmem:[%s155 + $0x6a8] sm:$0xff]
        %v396 = vld [vmem:[%s155 + $0x6b0] sm:$0xff]
        %v397 = vld [vmem:[%s155 + $0x6b8] sm:$0xff]
        %v398 = vld [vmem:[%s155 + $0x6c0] sm:$0xff]
        %v399 = vld [vmem:[%s155 + $0x6c8] sm:$0xff]
        %v400 = vld [vmem:[%s155 + $0x6d0] sm:$0xff]
        %v401 = vld [vmem:[%s155 + $0x6d8] sm:$0xff]
        %v402 = vld [vmem:[%s155 + $0x6e0] sm:$0xff]
        %v403 = vld [vmem:[%s155 + $0x6e8] sm:$0xff]
        %v404 = vld [vmem:[%s155 + $0x6f0] sm:$0xff]
        %v405 = vld [vmem:[%s155 + $0x6f8] sm:$0xff]
        %v406 = vld [vmem:[%s155 + $0x700] sm:$0xff]
        %v407 = vld [vmem:[%s155 + $0x708] sm:$0xff]
        %v408 = vld [vmem:[%s155 + $0x710] sm:$0xff]
        %v409 = vld [vmem:[%s155 + $0x718] sm:$0xff]
        %v410 = vld [vmem:[%s155 + $0x720] sm:$0xff]
        %v411 = vld [vmem:[%s155 + $0x728] sm:$0xff]
        %v412 = vld [vmem:[%s155 + $0x730] sm:$0xff]
        %v413 = vld [vmem:[%s155 + $0x738] sm:$0xff]
        %v414 = vld [vmem:[%s155 + $0x740] sm:$0xff]
        %v415 = vld [vmem:[%s155 + $0x748] sm:$0xff]
        %v416 = vld [vmem:[%s155 + $0x750] sm:$0xff]
        %v417 = vld [vmem:[%s155 + $0x758] sm:$0xff]
        %v418 = vld [vmem:[%s155 + $0x760] sm:$0xff]
        %v419 = vld [vmem:[%s155 + $0x768] sm:$0xff]
        %v420 = vld [vmem:[%s155 + $0x770] sm:$0xff]
        %v421 = vld [vmem:[%s155 + $0x778] sm:$0xff]
        %v422 = vld [vmem:[%s155 + $0x780] sm:$0xff]
        %v423 = vld [vmem:[%s155 + $0x788] sm:$0xff]
        %v424 = vld [vmem:[%s155 + $0x790] sm:$0xff]
        %v425 = vld [vmem:[%s155 + $0x798] sm:$0xff]
        %v426 = vld [vmem:[%s155 + $0x7a0] sm:$0xff]
        %v427 = vld [vmem:[%s155 + $0x7a8] sm:$0xff]
        %v428 = vld [vmem:[%s155 + $0x7b0] sm:$0xff]
        %v429 = vld [vmem:[%s155 + $0x7b8] sm:$0xff]
        %v430 = vld [vmem:[%s155 + $0x7c0] sm:$0xff]
        %v431 = vld [vmem:[%s155 + $0x7c8] sm:$0xff]
        %v432 = vld [vmem:[%s155 + $0x7d0] sm:$0xff]
        %v433 = vld [vmem:[%s155 + $0x7d8] sm:$0xff]
        %v434 = vld [vmem:[%s155 + $0x7e0] sm:$0xff]
        %v435 = vld [vmem:[%s155 + $0x7e8] sm:$0xff]
        %v436 = vld [vmem:[%s155 + $0x7f0] sm:$0xff]
        %v437 = vld [vmem:[%s155 + $0x7f8] sm:$0xff]
        %v442 = vunpack.c.l.b16 %v178
        %v443 = vunpack.c.h.b16 %v178
        %v444 = vunpack.c.l.b16 %v179
        %v445 = vunpack.c.h.b16 %v179
        %v446 = vunpack.c.l.b16 %v180
        %v447 = vunpack.c.h.b16 %v180
        %v448 = vunpack.c.l.b16 %v181
        %v449 = vunpack.c.h.b16 %v181
        %v450 = vpack.c.b16 %v442, %v442
        %v451 = vpack.c.b16 %v443, %v443
        %v452 = vpack.c.b16 %v444, %v444
        %v453 = vpack.c.b16 %v445, %v445
        %v454 = vpack.c.b16 %v446, %v446
        %v455 = vpack.c.b16 %v447, %v447
        %v456 = vpack.c.b16 %v448, %v448
        %v457 = vpack.c.b16 %v449, %v449
        %v722 = vunpack.c.l.b16 %v182
        %v723 = vunpack.c.h.b16 %v182
        %v724 = vunpack.c.l.b16 %v183
        %v725 = vunpack.c.h.b16 %v183
        %v726 = vunpack.c.l.b16 %v184
        %v727 = vunpack.c.h.b16 %v184
        %v728 = vunpack.c.l.b16 %v185
        %v729 = vunpack.c.h.b16 %v185
        %v730 = vunpack.c.l.b16 %v186
        %v731 = vunpack.c.h.b16 %v186
        %v732 = vunpack.c.l.b16 %v187
        %v733 = vunpack.c.h.b16 %v187
        %v734 = vunpack.c.l.b16 %v188
        %v735 = vunpack.c.h.b16 %v188
        %v736 = vunpack.c.l.b16 %v189
        %v737 = vunpack.c.h.b16 %v189
        %v738 = vunpack.c.l.b16 %v190
        %v739 = vunpack.c.h.b16 %v190
        %v740 = vunpack.c.l.b16 %v191
        %v741 = vunpack.c.h.b16 %v191
        %v742 = vunpack.c.l.b16 %v192
        %v743 = vunpack.c.h.b16 %v192
        %v744 = vunpack.c.l.b16 %v193
        %v745 = vunpack.c.h.b16 %v193
        %v746 = vunpack.c.l.b16 %v194
        %v747 = vunpack.c.h.b16 %v194
        %v748 = vunpack.c.l.b16 %v195
        %v749 = vunpack.c.h.b16 %v195
        %v750 = vunpack.c.l.b16 %v196
        %v751 = vunpack.c.h.b16 %v196
        %v752 = vunpack.c.l.b16 %v197
        %v753 = vunpack.c.h.b16 %v197
        %v754 = vunpack.c.l.b16 %v198
        %v755 = vunpack.c.h.b16 %v198
        %v756 = vunpack.c.l.b16 %v199
        %v757 = vunpack.c.h.b16 %v199
        %v758 = vunpack.c.l.b16 %v200
        %v759 = vunpack.c.h.b16 %v200
        %v760 = vunpack.c.l.b16 %v201
        %v761 = vunpack.c.h.b16 %v201
        %v762 = vunpack.c.l.b16 %v202
        %v763 = vunpack.c.h.b16 %v202
        %v764 = vunpack.c.l.b16 %v203
        %v765 = vunpack.c.h.b16 %v203
        %v766 = vunpack.c.l.b16 %v204
        %v767 = vunpack.c.h.b16 %v204
        %v768 = vunpack.c.l.b16 %v205
        %v769 = vunpack.c.h.b16 %v205
        %v770 = vunpack.c.l.b16 %v206
        %v771 = vunpack.c.h.b16 %v206
        %v772 = vunpack.c.l.b16 %v207
        %v773 = vunpack.c.h.b16 %v207
        %v774 = vunpack.c.l.b16 %v208
        %v775 = vunpack.c.h.b16 %v208
        %v776 = vunpack.c.l.b16 %v209
        %v777 = vunpack.c.h.b16 %v209
        %v778 = vunpack.c.l.b16 %v210
        %v779 = vunpack.c.h.b16 %v210
        %v780 = vunpack.c.l.b16 %v211
        %v781 = vunpack.c.h.b16 %v211
        %v782 = vunpack.c.l.b16 %v212
        %v783 = vunpack.c.h.b16 %v212
        %v784 = vunpack.c.l.b16 %v213
        %v785 = vunpack.c.h.b16 %v213
        %v786 = vunpack.c.l.b16 %v214
        %v787 = vunpack.c.h.b16 %v214
        %v788 = vunpack.c.l.b16 %v215
        %v789 = vunpack.c.h.b16 %v215
        %v790 = vunpack.c.l.b16 %v216
        %v791 = vunpack.c.h.b16 %v216
        %v792 = vunpack.c.l.b16 %v217
        %v793 = vunpack.c.h.b16 %v217
        %v794 = vunpack.c.l.b16 %v218
        %v795 = vunpack.c.h.b16 %v218
        %v796 = vunpack.c.l.b16 %v219
        %v797 = vunpack.c.h.b16 %v219
        %v798 = vunpack.c.l.b16 %v220
        %v799 = vunpack.c.h.b16 %v220
        %v800 = vunpack.c.l.b16 %v221
        %v801 = vunpack.c.h.b16 %v221
        %v802 = vunpack.c.l.b16 %v222
        %v803 = vunpack.c.h.b16 %v222
        %v804 = vunpack.c.l.b16 %v223
        %v805 = vunpack.c.h.b16 %v223
        %v806 = vunpack.c.l.b16 %v224
        %v807 = vunpack.c.h.b16 %v224
        %v808 = vunpack.c.l.b16 %v225
        %v809 = vunpack.c.h.b16 %v225
        %v810 = vunpack.c.l.b16 %v226
        %v811 = vunpack.c.h.b16 %v226
        %v812 = vunpack.c.l.b16 %v227
        %v813 = vunpack.c.h.b16 %v227
        %v814 = vunpack.c.l.b16 %v228
        %v815 = vunpack.c.h.b16 %v228
        %v816 = vunpack.c.l.b16 %v229
        %v817 = vunpack.c.h.b16 %v229
        %v818 = vunpack.c.l.b16 %v230
        %v819 = vunpack.c.h.b16 %v230
        %v820 = vunpack.c.l.b16 %v231
        %v821 = vunpack.c.h.b16 %v231
        %v822 = vunpack.c.l.b16 %v232
        %v823 = vunpack.c.h.b16 %v232
        %v824 = vunpack.c.l.b16 %v233
        %v825 = vunpack.c.h.b16 %v233
        %v826 = vunpack.c.l.b16 %v234
        %v827 = vunpack.c.h.b16 %v234
        %v828 = vunpack.c.l.b16 %v235
        %v829 = vunpack.c.h.b16 %v235
        %v830 = vunpack.c.l.b16 %v236
        %v831 = vunpack.c.h.b16 %v236
        %v832 = vunpack.c.l.b16 %v237
        %v833 = vunpack.c.h.b16 %v237
        %v834 = vunpack.c.l.b16 %v238
        %v835 = vunpack.c.h.b16 %v238
        %v836 = vunpack.c.l.b16 %v239
        %v837 = vunpack.c.h.b16 %v239
        %v838 = vunpack.c.l.b16 %v240
        %v839 = vunpack.c.h.b16 %v240
        %v840 = vunpack.c.l.b16 %v241
        %v841 = vunpack.c.h.b16 %v241
        %v842 = vunpack.c.l.b16 %v242
        %v843 = vunpack.c.h.b16 %v242
        %v844 = vunpack.c.l.b16 %v243
        %v845 = vunpack.c.h.b16 %v243
        %v846 = vunpack.c.l.b16 %v244
        %v847 = vunpack.c.h.b16 %v244
        %v848 = vunpack.c.l.b16 %v245
        %v849 = vunpack.c.h.b16 %v245
        %v850 = vunpack.c.l.b16 %v246
        %v851 = vunpack.c.h.b16 %v246
        %v852 = vunpack.c.l.b16 %v247
        %v853 = vunpack.c.h.b16 %v247
        %v854 = vunpack.c.l.b16 %v248
        %v855 = vunpack.c.h.b16 %v248
        %v856 = vunpack.c.l.b16 %v249
        %v857 = vunpack.c.h.b16 %v249
        %v858 = vunpack.c.l.b16 %v250
        %v859 = vunpack.c.h.b16 %v250
        %v860 = vunpack.c.l.b16 %v251
        %v861 = vunpack.c.h.b16 %v251
        %v862 = vunpack.c.l.b16 %v252
        %v863 = vunpack.c.h.b16 %v252
        %v864 = vunpack.c.l.b16 %v253
        %v865 = vunpack.c.h.b16 %v253
        %v866 = vunpack.c.l.b16 %v254
        %v867 = vunpack.c.h.b16 %v254
        %v868 = vunpack.c.l.b16 %v255
        %v869 = vunpack.c.h.b16 %v255
        %v870 = vunpack.c.l.b16 %v256
        %v871 = vunpack.c.h.b16 %v256
        %v872 = vunpack.c.l.b16 %v257
        %v873 = vunpack.c.h.b16 %v257
        %v874 = vunpack.c.l.b16 %v258
        %v875 = vunpack.c.h.b16 %v258
        %v876 = vunpack.c.l.b16 %v259
        %v877 = vunpack.c.h.b16 %v259
        %v878 = vunpack.c.l.b16 %v260
        %v879 = vunpack.c.h.b16 %v260
        %v880 = vunpack.c.l.b16 %v261
        %v881 = vunpack.c.h.b16 %v261
        %v882 = vunpack.c.l.b16 %v262
        %v883 = vunpack.c.h.b16 %v262
        %v884 = vunpack.c.l.b16 %v263
        %v885 = vunpack.c.h.b16 %v263
        %v886 = vunpack.c.l.b16 %v264
        %v887 = vunpack.c.h.b16 %v264
        %v888 = vunpack.c.l.b16 %v265
        %v889 = vunpack.c.h.b16 %v265
        %v890 = vunpack.c.l.b16 %v266
        %v891 = vunpack.c.h.b16 %v266
        %v892 = vunpack.c.l.b16 %v267
        %v893 = vunpack.c.h.b16 %v267
        %v894 = vunpack.c.l.b16 %v268
        %v895 = vunpack.c.h.b16 %v268
        %v896 = vunpack.c.l.b16 %v269
        %v897 = vunpack.c.h.b16 %v269
        %v898 = vunpack.c.l.b16 %v270
        %v899 = vunpack.c.h.b16 %v270
        %v900 = vunpack.c.l.b16 %v271
        %v901 = vunpack.c.h.b16 %v271
        %v902 = vunpack.c.l.b16 %v272
        %v903 = vunpack.c.h.b16 %v272
        %v904 = vunpack.c.l.b16 %v273
        %v905 = vunpack.c.h.b16 %v273
        %v906 = vunpack.c.l.b16 %v274
        %v907 = vunpack.c.h.b16 %v274
        %v908 = vunpack.c.l.b16 %v275
        %v909 = vunpack.c.h.b16 %v275
        %v910 = vunpack.c.l.b16 %v276
        %v911 = vunpack.c.h.b16 %v276
        %v912 = vunpack.c.l.b16 %v277
        %v913 = vunpack.c.h.b16 %v277
        %v914 = vunpack.c.l.b16 %v278
        %v915 = vunpack.c.h.b16 %v278
        %v916 = vunpack.c.l.b16 %v279
        %v917 = vunpack.c.h.b16 %v279
        %v918 = vunpack.c.l.b16 %v280
        %v919 = vunpack.c.h.b16 %v280
        %v920 = vunpack.c.l.b16 %v281
        %v921 = vunpack.c.h.b16 %v281
        %v922 = vunpack.c.l.b16 %v282
        %v923 = vunpack.c.h.b16 %v282
        %v924 = vunpack.c.l.b16 %v283
        %v925 = vunpack.c.h.b16 %v283
        %v926 = vunpack.c.l.b16 %v284
        %v927 = vunpack.c.h.b16 %v284
        %v928 = vunpack.c.l.b16 %v285
        %v929 = vunpack.c.h.b16 %v285
        %v930 = vunpack.c.l.b16 %v286
        %v931 = vunpack.c.h.b16 %v286
        %v932 = vunpack.c.l.b16 %v287
        %v933 = vunpack.c.h.b16 %v287
        %v934 = vunpack.c.l.b16 %v288
        %v935 = vunpack.c.h.b16 %v288
        %v936 = vunpack.c.l.b16 %v289
        %v937 = vunpack.c.h.b16 %v289
        %v938 = vunpack.c.l.b16 %v290
        %v939 = vunpack.c.h.b16 %v290
        %v940 = vunpack.c.l.b16 %v291
        %v941 = vunpack.c.h.b16 %v291
        %v942 = vunpack.c.l.b16 %v292
        %v943 = vunpack.c.h.b16 %v292
        %v944 = vunpack.c.l.b16 %v293
        %v945 = vunpack.c.h.b16 %v293
        %v946 = vunpack.c.l.b16 %v294
        %v947 = vunpack.c.h.b16 %v294
        %v948 = vunpack.c.l.b16 %v295
        %v949 = vunpack.c.h.b16 %v295
        %v950 = vunpack.c.l.b16 %v296
        %v951 = vunpack.c.h.b16 %v296
        %v952 = vunpack.c.l.b16 %v297
        %v953 = vunpack.c.h.b16 %v297
        %v954 = vunpack.c.l.b16 %v298
        %v955 = vunpack.c.h.b16 %v298
        %v956 = vunpack.c.l.b16 %v299
        %v957 = vunpack.c.h.b16 %v299
        %v958 = vunpack.c.l.b16 %v300
        %v959 = vunpack.c.h.b16 %v300
        %v960 = vunpack.c.l.b16 %v301
        %v961 = vunpack.c.h.b16 %v301
        %v962 = vunpack.c.l.b16 %v302
        %v963 = vunpack.c.h.b16 %v302
        %v964 = vunpack.c.l.b16 %v303
        %v965 = vunpack.c.h.b16 %v303
        %v966 = vunpack.c.l.b16 %v304
        %v967 = vunpack.c.h.b16 %v304
        %v968 = vunpack.c.l.b16 %v305
        %v969 = vunpack.c.h.b16 %v305
        %v970 = vunpack.c.l.b16 %v306
        %v971 = vunpack.c.h.b16 %v306
        %v972 = vunpack.c.l.b16 %v307
        %v973 = vunpack.c.h.b16 %v307
        %v974 = vunpack.c.l.b16 %v308
        %v975 = vunpack.c.h.b16 %v308
        %v976 = vunpack.c.l.b16 %v309
        %v977 = vunpack.c.h.b16 %v309
        %v978 = vunpack.c.l.b16 %v310
        %v979 = vunpack.c.h.b16 %v310
        %v980 = vunpack.c.l.b16 %v311
        %v981 = vunpack.c.h.b16 %v311
        %v982 = vunpack.c.l.b16 %v312
        %v983 = vunpack.c.h.b16 %v312
        %v984 = vunpack.c.l.b16 %v313
        %v985 = vunpack.c.h.b16 %v313
        %v986 = vunpack.c.l.b16 %v314
        %v987 = vunpack.c.h.b16 %v314
        %v988 = vunpack.c.l.b16 %v315
        %v989 = vunpack.c.h.b16 %v315
        %v990 = vunpack.c.l.b16 %v316
        %v991 = vunpack.c.h.b16 %v316
        %v992 = vunpack.c.l.b16 %v317
        %v993 = vunpack.c.h.b16 %v317
        %v994 = vunpack.c.l.b16 %v318
        %v995 = vunpack.c.h.b16 %v318
        %v996 = vunpack.c.l.b16 %v319
        %v997 = vunpack.c.h.b16 %v319
        %v998 = vunpack.c.l.b16 %v320
        %v999 = vunpack.c.h.b16 %v320
        %v1000 = vunpack.c.l.b16 %v321
        %v1001 = vunpack.c.h.b16 %v321
        %v1002 = vunpack.c.l.b16 %v322
        %v1003 = vunpack.c.h.b16 %v322
        %v1004 = vunpack.c.l.b16 %v323
        %v1005 = vunpack.c.h.b16 %v323
        %v1006 = vunpack.c.l.b16 %v324
        %v1007 = vunpack.c.h.b16 %v324
        %v1008 = vunpack.c.l.b16 %v325
        %v1009 = vunpack.c.h.b16 %v325
        %v1010 = vunpack.c.l.b16 %v326
        %v1011 = vunpack.c.h.b16 %v326
        %v1012 = vunpack.c.l.b16 %v327
        %v1013 = vunpack.c.h.b16 %v327
        %v1014 = vunpack.c.l.b16 %v328
        %v1015 = vunpack.c.h.b16 %v328
        %v1016 = vunpack.c.l.b16 %v329
        %v1017 = vunpack.c.h.b16 %v329
        %v1018 = vunpack.c.l.b16 %v330
        %v1019 = vunpack.c.h.b16 %v330
        %v1020 = vunpack.c.l.b16 %v331
        %v1021 = vunpack.c.h.b16 %v331
        %v1022 = vunpack.c.l.b16 %v332
        %v1023 = vunpack.c.h.b16 %v332
        %v1024 = vunpack.c.l.b16 %v333
        %v1025 = vunpack.c.h.b16 %v333
        %v1026 = vunpack.c.l.b16 %v334
        %v1027 = vunpack.c.h.b16 %v334
        %v1028 = vunpack.c.l.b16 %v335
        %v1029 = vunpack.c.h.b16 %v335
        %v1030 = vunpack.c.l.b16 %v336
        %v1031 = vunpack.c.h.b16 %v336
        %v1032 = vunpack.c.l.b16 %v337
        %v1033 = vunpack.c.h.b16 %v337
        %v1034 = vunpack.c.l.b16 %v338
        %v1035 = vunpack.c.h.b16 %v338
        %v1036 = vunpack.c.l.b16 %v339
        %v1037 = vunpack.c.h.b16 %v339
        %v1038 = vunpack.c.l.b16 %v340
        %v1039 = vunpack.c.h.b16 %v340
        %v1040 = vunpack.c.l.b16 %v341
        %v1041 = vunpack.c.h.b16 %v341
        %v1042 = vunpack.c.l.b16 %v342
        %v1043 = vunpack.c.h.b16 %v342
        %v1044 = vunpack.c.l.b16 %v343
        %v1045 = vunpack.c.h.b16 %v343
        %v1046 = vunpack.c.l.b16 %v344
        %v1047 = vunpack.c.h.b16 %v344
        %v1048 = vunpack.c.l.b16 %v345
        %v1049 = vunpack.c.h.b16 %v345
        %v1050 = vunpack.c.l.b16 %v346
        %v1051 = vunpack.c.h.b16 %v346
        %v1052 = vunpack.c.l.b16 %v347
        %v1053 = vunpack.c.h.b16 %v347
        %v1054 = vunpack.c.l.b16 %v348
        %v1055 = vunpack.c.h.b16 %v348
        %v1056 = vunpack.c.l.b16 %v349
        %v1057 = vunpack.c.h.b16 %v349
        %v1058 = vunpack.c.l.b16 %v350
        %v1059 = vunpack.c.h.b16 %v350
        %v1060 = vunpack.c.l.b16 %v351
        %v1061 = vunpack.c.h.b16 %v351
        %v1062 = vunpack.c.l.b16 %v352
        %v1063 = vunpack.c.h.b16 %v352
        %v1064 = vunpack.c.l.b16 %v353
        %v1065 = vunpack.c.h.b16 %v353
        %v1066 = vunpack.c.l.b16 %v354
        %v1067 = vunpack.c.h.b16 %v354
        %v1068 = vunpack.c.l.b16 %v355
        %v1069 = vunpack.c.h.b16 %v355
        %v1070 = vunpack.c.l.b16 %v356
        %v1071 = vunpack.c.h.b16 %v356
        %v1072 = vunpack.c.l.b16 %v357
        %v1073 = vunpack.c.h.b16 %v357
        %v1074 = vunpack.c.l.b16 %v358
        %v1075 = vunpack.c.h.b16 %v358
        %v1076 = vunpack.c.l.b16 %v359
        %v1077 = vunpack.c.h.b16 %v359
        %v1078 = vunpack.c.l.b16 %v360
        %v1079 = vunpack.c.h.b16 %v360
        %v1080 = vunpack.c.l.b16 %v361
        %v1081 = vunpack.c.h.b16 %v361
        %v1082 = vunpack.c.l.b16 %v362
        %v1083 = vunpack.c.h.b16 %v362
        %v1084 = vunpack.c.l.b16 %v363
        %v1085 = vunpack.c.h.b16 %v363
        %v1086 = vunpack.c.l.b16 %v364
        %v1087 = vunpack.c.h.b16 %v364
        %v1088 = vunpack.c.l.b16 %v365
        %v1089 = vunpack.c.h.b16 %v365
        %v1090 = vunpack.c.l.b16 %v366
        %v1091 = vunpack.c.h.b16 %v366
        %v1092 = vunpack.c.l.b16 %v367
        %v1093 = vunpack.c.h.b16 %v367
        %v1094 = vunpack.c.l.b16 %v368
        %v1095 = vunpack.c.h.b16 %v368
        %v1096 = vunpack.c.l.b16 %v369
        %v1097 = vunpack.c.h.b16 %v369
        %v1098 = vunpack.c.l.b16 %v370
        %v1099 = vunpack.c.h.b16 %v370
        %v1100 = vunpack.c.l.b16 %v371
        %v1101 = vunpack.c.h.b16 %v371
        %v1102 = vunpack.c.l.b16 %v372
        %v1103 = vunpack.c.h.b16 %v372
        %v1104 = vunpack.c.l.b16 %v373
        %v1105 = vunpack.c.h.b16 %v373
        %v1106 = vunpack.c.l.b16 %v374
        %v1107 = vunpack.c.h.b16 %v374
        %v1108 = vunpack.c.l.b16 %v375
        %v1109 = vunpack.c.h.b16 %v375
        %v1110 = vunpack.c.l.b16 %v376
        %v1111 = vunpack.c.h.b16 %v376
        %v1112 = vunpack.c.l.b16 %v377
        %v1113 = vunpack.c.h.b16 %v377
        %v1114 = vunpack.c.l.b16 %v378
        %v1115 = vunpack.c.h.b16 %v378
        %v1116 = vunpack.c.l.b16 %v379
        %v1117 = vunpack.c.h.b16 %v379
        %v1118 = vunpack.c.l.b16 %v380
        %v1119 = vunpack.c.h.b16 %v380
        %v1120 = vunpack.c.l.b16 %v381
        %v1121 = vunpack.c.h.b16 %v381
        %v1122 = vunpack.c.l.b16 %v382
        %v1123 = vunpack.c.h.b16 %v382
        %v1124 = vunpack.c.l.b16 %v383
        %v1125 = vunpack.c.h.b16 %v383
        %v1126 = vunpack.c.l.b16 %v384
        %v1127 = vunpack.c.h.b16 %v384
        %v1128 = vunpack.c.l.b16 %v385
        %v1129 = vunpack.c.h.b16 %v385
        %v1130 = vunpack.c.l.b16 %v386
        %v1131 = vunpack.c.h.b16 %v386
        %v1132 = vunpack.c.l.b16 %v387
        %v1133 = vunpack.c.h.b16 %v387
        %v1134 = vunpack.c.l.b16 %v388
        %v1135 = vunpack.c.h.b16 %v388
        %v1136 = vunpack.c.l.b16 %v389
        %v1137 = vunpack.c.h.b16 %v389
        %v1138 = vunpack.c.l.b16 %v390
        %v1139 = vunpack.c.h.b16 %v390
        %v1140 = vunpack.c.l.b16 %v391
        %v1141 = vunpack.c.h.b16 %v391
        %v1142 = vunpack.c.l.b16 %v392
        %v1143 = vunpack.c.h.b16 %v392
        %v1144 = vunpack.c.l.b16 %v393
        %v1145 = vunpack.c.h.b16 %v393
        %v1146 = vunpack.c.l.b16 %v394
        %v1147 = vunpack.c.h.b16 %v394
        %v1148 = vunpack.c.l.b16 %v395
        %v1149 = vunpack.c.h.b16 %v395
        %v1150 = vunpack.c.l.b16 %v396
        %v1151 = vunpack.c.h.b16 %v396
        %v1152 = vunpack.c.l.b16 %v397
        %v1153 = vunpack.c.h.b16 %v397
        %v1154 = vunpack.c.l.b16 %v398
        %v1155 = vunpack.c.h.b16 %v398
        %v1156 = vunpack.c.l.b16 %v399
        %v1157 = vunpack.c.h.b16 %v399
        %v1158 = vunpack.c.l.b16 %v400
        %v1159 = vunpack.c.h.b16 %v400
        %v1160 = vunpack.c.l.b16 %v401
        %v1161 = vunpack.c.h.b16 %v401
        %v1162 = vunpack.c.l.b16 %v402
        %v1163 = vunpack.c.h.b16 %v402
        %v1164 = vunpack.c.l.b16 %v403
        %v1165 = vunpack.c.h.b16 %v403
        %v1166 = vunpack.c.l.b16 %v404
        %v1167 = vunpack.c.h.b16 %v404
        %v1168 = vunpack.c.l.b16 %v405
        %v1169 = vunpack.c.h.b16 %v405
        %v1170 = vunpack.c.l.b16 %v406
        %v1171 = vunpack.c.h.b16 %v406
        %v1172 = vunpack.c.l.b16 %v407
        %v1173 = vunpack.c.h.b16 %v407
        %v1174 = vunpack.c.l.b16 %v408
        %v1175 = vunpack.c.h.b16 %v408
        %v1176 = vunpack.c.l.b16 %v409
        %v1177 = vunpack.c.h.b16 %v409
        %v1178 = vunpack.c.l.b16 %v410
        %v1179 = vunpack.c.h.b16 %v410
        %v1180 = vunpack.c.l.b16 %v411
        %v1181 = vunpack.c.h.b16 %v411
        %v1182 = vunpack.c.l.b16 %v412
        %v1183 = vunpack.c.h.b16 %v412
        %v1184 = vunpack.c.l.b16 %v413
        %v1185 = vunpack.c.h.b16 %v413
        %v1186 = vunpack.c.l.b16 %v414
        %v1187 = vunpack.c.h.b16 %v414
        %v1188 = vunpack.c.l.b16 %v415
        %v1189 = vunpack.c.h.b16 %v415
        %v1190 = vunpack.c.l.b16 %v416
        %v1191 = vunpack.c.h.b16 %v416
        %v1192 = vunpack.c.l.b16 %v417
        %v1193 = vunpack.c.h.b16 %v417
        %v1194 = vunpack.c.l.b16 %v418
        %v1195 = vunpack.c.h.b16 %v418
        %v1196 = vunpack.c.l.b16 %v419
        %v1197 = vunpack.c.h.b16 %v419
        %v1198 = vunpack.c.l.b16 %v420
        %v1199 = vunpack.c.h.b16 %v420
        %v1200 = vunpack.c.l.b16 %v421
        %v1201 = vunpack.c.h.b16 %v421
        %v1202 = vunpack.c.l.b16 %v422
        %v1203 = vunpack.c.h.b16 %v422
        %v1204 = vunpack.c.l.b16 %v423
        %v1205 = vunpack.c.h.b16 %v423
        %v1206 = vunpack.c.l.b16 %v424
        %v1207 = vunpack.c.h.b16 %v424
        %v1208 = vunpack.c.l.b16 %v425
        %v1209 = vunpack.c.h.b16 %v425
        %v1210 = vunpack.c.l.b16 %v426
        %v1211 = vunpack.c.h.b16 %v426
        %v1212 = vunpack.c.l.b16 %v427
        %v1213 = vunpack.c.h.b16 %v427
        %v1214 = vunpack.c.l.b16 %v428
        %v1215 = vunpack.c.h.b16 %v428
        %v1216 = vunpack.c.l.b16 %v429
        %v1217 = vunpack.c.h.b16 %v429
        %v1218 = vunpack.c.l.b16 %v430
        %v1219 = vunpack.c.h.b16 %v430
        %v1220 = vunpack.c.l.b16 %v431
        %v1221 = vunpack.c.h.b16 %v431
        %v1222 = vunpack.c.l.b16 %v432
        %v1223 = vunpack.c.h.b16 %v432
        %v1224 = vunpack.c.l.b16 %v433
        %v1225 = vunpack.c.h.b16 %v433
        %v1226 = vunpack.c.l.b16 %v434
        %v1227 = vunpack.c.h.b16 %v434
        %v1228 = vunpack.c.l.b16 %v435
        %v1229 = vunpack.c.h.b16 %v435
        %v1230 = vunpack.c.l.b16 %v436
        %v1231 = vunpack.c.h.b16 %v436
        %v1232 = vunpack.c.l.b16 %v437
        %v1233 = vunpack.c.h.b16 %v437
        %v1234 = vpack.c.b16 %v730, %v722
        %v1235 = vpack.c.b16 %v731, %v723
        %v1236 = vpack.c.b16 %v732, %v724
        %v1237 = vpack.c.b16 %v733, %v725
        %v1238 = vpack.c.b16 %v734, %v726
        %v1239 = vpack.c.b16 %v735, %v727
        %v1240 = vpack.c.b16 %v736, %v728
        %v1241 = vpack.c.b16 %v737, %v729
        %v1242 = vpack.c.b16 %v746, %v738
        %v1243 = vpack.c.b16 %v747, %v739
        %v1244 = vpack.c.b16 %v748, %v740
        %v1245 = vpack.c.b16 %v749, %v741
        %v1246 = vpack.c.b16 %v750, %v742
        %v1247 = vpack.c.b16 %v751, %v743
        %v1248 = vpack.c.b16 %v752, %v744
        %v1249 = vpack.c.b16 %v753, %v745
        %v1250 = vpack.c.b16 %v762, %v754
        %v1251 = vpack.c.b16 %v763, %v755
        %v1252 = vpack.c.b16 %v764, %v756
        %v1253 = vpack.c.b16 %v765, %v757
        %v1254 = vpack.c.b16 %v766, %v758
        %v1255 = vpack.c.b16 %v767, %v759
        %v1256 = vpack.c.b16 %v768, %v760
        %v1257 = vpack.c.b16 %v769, %v761
        %v1258 = vpack.c.b16 %v778, %v770
        %v1259 = vpack.c.b16 %v779, %v771
        %v1260 = vpack.c.b16 %v780, %v772
        %v1261 = vpack.c.b16 %v781, %v773
        %v1262 = vpack.c.b16 %v782, %v774
        %v1263 = vpack.c.b16 %v783, %v775
        %v1264 = vpack.c.b16 %v784, %v776
        %v1265 = vpack.c.b16 %v785, %v777
        %v1266 = vpack.c.b16 %v794, %v786
        %v1267 = vpack.c.b16 %v795, %v787
        %v1268 = vpack.c.b16 %v796, %v788
        %v1269 = vpack.c.b16 %v797, %v789
        %v1270 = vpack.c.b16 %v798, %v790
        %v1271 = vpack.c.b16 %v799, %v791
        %v1272 = vpack.c.b16 %v800, %v792
        %v1273 = vpack.c.b16 %v801, %v793
        %v1274 = vpack.c.b16 %v810, %v802
        %v1275 = vpack.c.b16 %v811, %v803
        %v1276 = vpack.c.b16 %v812, %v804
        %v1277 = vpack.c.b16 %v813, %v805
        %v1278 = vpack.c.b16 %v814, %v806
        %v1279 = vpack.c.b16 %v815, %v807
        %v1280 = vpack.c.b16 %v816, %v808
        %v1281 = vpack.c.b16 %v817, %v809
        %v1282 = vpack.c.b16 %v826, %v818
        %v1283 = vpack.c.b16 %v827, %v819
        %v1284 = vpack.c.b16 %v828, %v820
        %v1285 = vpack.c.b16 %v829, %v821
        %v1286 = vpack.c.b16 %v830, %v822
        %v1287 = vpack.c.b16 %v831, %v823
        %v1288 = vpack.c.b16 %v832, %v824
        %v1289 = vpack.c.b16 %v833, %v825
        %v1290 = vpack.c.b16 %v842, %v834
        %v1291 = vpack.c.b16 %v843, %v835
        %v1292 = vpack.c.b16 %v844, %v836
        %v1293 = vpack.c.b16 %v845, %v837
        %v1294 = vpack.c.b16 %v846, %v838
        %v1295 = vpack.c.b16 %v847, %v839
        %v1296 = vpack.c.b16 %v848, %v840
        %v1297 = vpack.c.b16 %v849, %v841
        %v1298 = vpack.c.b16 %v858, %v850
        %v1299 = vpack.c.b16 %v859, %v851
        %v1300 = vpack.c.b16 %v860, %v852
        %v1301 = vpack.c.b16 %v861, %v853
        %v1302 = vpack.c.b16 %v862, %v854
        %v1303 = vpack.c.b16 %v863, %v855
        %v1304 = vpack.c.b16 %v864, %v856
        %v1305 = vpack.c.b16 %v865, %v857
        %v1306 = vpack.c.b16 %v874, %v866
        %v1307 = vpack.c.b16 %v875, %v867
        %v1308 = vpack.c.b16 %v876, %v868
        %v1309 = vpack.c.b16 %v877, %v869
        %v1310 = vpack.c.b16 %v878, %v870
        %v1311 = vpack.c.b16 %v879, %v871
        %v1312 = vpack.c.b16 %v880, %v872
        %v1313 = vpack.c.b16 %v881, %v873
        %v1314 = vpack.c.b16 %v890, %v882
        %v1315 = vpack.c.b16 %v891, %v883
        %v1316 = vpack.c.b16 %v892, %v884
        %v1317 = vpack.c.b16 %v893, %v885
        %v1318 = vpack.c.b16 %v894, %v886
        %v1319 = vpack.c.b16 %v895, %v887
        %v1320 = vpack.c.b16 %v896, %v888
        %v1321 = vpack.c.b16 %v897, %v889
        %v1322 = vpack.c.b16 %v906, %v898
        %v1323 = vpack.c.b16 %v907, %v899
        %v1324 = vpack.c.b16 %v908, %v900
        %v1325 = vpack.c.b16 %v909, %v901
        %v1326 = vpack.c.b16 %v910, %v902
        %v1327 = vpack.c.b16 %v911, %v903
        %v1328 = vpack.c.b16 %v912, %v904
        %v1329 = vpack.c.b16 %v913, %v905
        %v1330 = vpack.c.b16 %v922, %v914
        %v1331 = vpack.c.b16 %v923, %v915
        %v1332 = vpack.c.b16 %v924, %v916
        %v1333 = vpack.c.b16 %v925, %v917
        %v1334 = vpack.c.b16 %v926, %v918
        %v1335 = vpack.c.b16 %v927, %v919
        %v1336 = vpack.c.b16 %v928, %v920
        %v1337 = vpack.c.b16 %v929, %v921
        %v1338 = vpack.c.b16 %v938, %v930
        %v1339 = vpack.c.b16 %v939, %v931
        %v1340 = vpack.c.b16 %v940, %v932
        %v1341 = vpack.c.b16 %v941, %v933
        %v1342 = vpack.c.b16 %v942, %v934
        %v1343 = vpack.c.b16 %v943, %v935
        %v1344 = vpack.c.b16 %v944, %v936
        %v1345 = vpack.c.b16 %v945, %v937
        %v1346 = vpack.c.b16 %v954, %v946
        %v1347 = vpack.c.b16 %v955, %v947
        %v1348 = vpack.c.b16 %v956, %v948
        %v1349 = vpack.c.b16 %v957, %v949
        %v1350 = vpack.c.b16 %v958, %v950
        %v1351 = vpack.c.b16 %v959, %v951
        %v1352 = vpack.c.b16 %v960, %v952
        %v1353 = vpack.c.b16 %v961, %v953
        %v1354 = vpack.c.b16 %v970, %v962
        %v1355 = vpack.c.b16 %v971, %v963
        %v1356 = vpack.c.b16 %v972, %v964
        %v1357 = vpack.c.b16 %v973, %v965
        %v1358 = vpack.c.b16 %v974, %v966
        %v1359 = vpack.c.b16 %v975, %v967
        %v1360 = vpack.c.b16 %v976, %v968
        %v1361 = vpack.c.b16 %v977, %v969
        %v1362 = vpack.c.b16 %v986, %v978
        %v1363 = vpack.c.b16 %v987, %v979
        %v1364 = vpack.c.b16 %v988, %v980
        %v1365 = vpack.c.b16 %v989, %v981
        %v1366 = vpack.c.b16 %v990, %v982
        %v1367 = vpack.c.b16 %v991, %v983
        %v1368 = vpack.c.b16 %v992, %v984
        %v1369 = vpack.c.b16 %v993, %v985
        %v1370 = vpack.c.b16 %v1002, %v994
        %v1371 = vpack.c.b16 %v1003, %v995
        %v1372 = vpack.c.b16 %v1004, %v996
        %v1373 = vpack.c.b16 %v1005, %v997
        %v1374 = vpack.c.b16 %v1006, %v998
        %v1375 = vpack.c.b16 %v1007, %v999
        %v1376 = vpack.c.b16 %v1008, %v1000
        %v1377 = vpack.c.b16 %v1009, %v1001
        %v1378 = vpack.c.b16 %v1018, %v1010
        %v1379 = vpack.c.b16 %v1019, %v1011
        %v1380 = vpack.c.b16 %v1020, %v1012
        %v1381 = vpack.c.b16 %v1021, %v1013
        %v1382 = vpack.c.b16 %v1022, %v1014
        %v1383 = vpack.c.b16 %v1023, %v1015
        %v1384 = vpack.c.b16 %v1024, %v1016
        %v1385 = vpack.c.b16 %v1025, %v1017
        %v1386 = vpack.c.b16 %v1034, %v1026
        %v1387 = vpack.c.b16 %v1035, %v1027
        %v1388 = vpack.c.b16 %v1036, %v1028
        %v1389 = vpack.c.b16 %v1037, %v1029
        %v1390 = vpack.c.b16 %v1038, %v1030
        %v1391 = vpack.c.b16 %v1039, %v1031
        %v1392 = vpack.c.b16 %v1040, %v1032
        %v1393 = vpack.c.b16 %v1041, %v1033
        %v1394 = vpack.c.b16 %v1050, %v1042
        %v1395 = vpack.c.b16 %v1051, %v1043
        %v1396 = vpack.c.b16 %v1052, %v1044
        %v1397 = vpack.c.b16 %v1053, %v1045
        %v1398 = vpack.c.b16 %v1054, %v1046
        %v1399 = vpack.c.b16 %v1055, %v1047
        %v1400 = vpack.c.b16 %v1056, %v1048
        %v1401 = vpack.c.b16 %v1057, %v1049
        %v1402 = vpack.c.b16 %v1066, %v1058
        %v1403 = vpack.c.b16 %v1067, %v1059
        %v1404 = vpack.c.b16 %v1068, %v1060
        %v1405 = vpack.c.b16 %v1069, %v1061
        %v1406 = vpack.c.b16 %v1070, %v1062
        %v1407 = vpack.c.b16 %v1071, %v1063
        %v1408 = vpack.c.b16 %v1072, %v1064
        %v1409 = vpack.c.b16 %v1073, %v1065
        %v1410 = vpack.c.b16 %v1082, %v1074
        %v1411 = vpack.c.b16 %v1083, %v1075
        %v1412 = vpack.c.b16 %v1084, %v1076
        %v1413 = vpack.c.b16 %v1085, %v1077
        %v1414 = vpack.c.b16 %v1086, %v1078
        %v1415 = vpack.c.b16 %v1087, %v1079
        %v1416 = vpack.c.b16 %v1088, %v1080
        %v1417 = vpack.c.b16 %v1089, %v1081
        %v1418 = vpack.c.b16 %v1098, %v1090
        %v1419 = vpack.c.b16 %v1099, %v1091
        %v1420 = vpack.c.b16 %v1100, %v1092
        %v1421 = vpack.c.b16 %v1101, %v1093
        %v1422 = vpack.c.b16 %v1102, %v1094
        %v1423 = vpack.c.b16 %v1103, %v1095
        %v1424 = vpack.c.b16 %v1104, %v1096
        %v1425 = vpack.c.b16 %v1105, %v1097
        %v1426 = vpack.c.b16 %v1114, %v1106
        %v1427 = vpack.c.b16 %v1115, %v1107
        %v1428 = vpack.c.b16 %v1116, %v1108
        %v1429 = vpack.c.b16 %v1117, %v1109
        %v1430 = vpack.c.b16 %v1118, %v1110
        %v1431 = vpack.c.b16 %v1119, %v1111
        %v1432 = vpack.c.b16 %v1120, %v1112
        %v1433 = vpack.c.b16 %v1121, %v1113
        %v1434 = vpack.c.b16 %v1130, %v1122
        %v1435 = vpack.c.b16 %v1131, %v1123
        %v1436 = vpack.c.b16 %v1132, %v1124
        %v1437 = vpack.c.b16 %v1133, %v1125
        %v1438 = vpack.c.b16 %v1134, %v1126
        %v1439 = vpack.c.b16 %v1135, %v1127
        %v1440 = vpack.c.b16 %v1136, %v1128
        %v1441 = vpack.c.b16 %v1137, %v1129
        %v1442 = vpack.c.b16 %v1146, %v1138
        %v1443 = vpack.c.b16 %v1147, %v1139
        %v1444 = vpack.c.b16 %v1148, %v1140
        %v1445 = vpack.c.b16 %v1149, %v1141
        %v1446 = vpack.c.b16 %v1150, %v1142
        %v1447 = vpack.c.b16 %v1151, %v1143
        %v1448 = vpack.c.b16 %v1152, %v1144
        %v1449 = vpack.c.b16 %v1153, %v1145
        %v1450 = vpack.c.b16 %v1162, %v1154
        %v1451 = vpack.c.b16 %v1163, %v1155
        %v1452 = vpack.c.b16 %v1164, %v1156
        %v1453 = vpack.c.b16 %v1165, %v1157
        %v1454 = vpack.c.b16 %v1166, %v1158
        %v1455 = vpack.c.b16 %v1167, %v1159
        %v1456 = vpack.c.b16 %v1168, %v1160
        %v1457 = vpack.c.b16 %v1169, %v1161
        %v1458 = vpack.c.b16 %v1178, %v1170
        %v1459 = vpack.c.b16 %v1179, %v1171
        %v1460 = vpack.c.b16 %v1180, %v1172
        %v1461 = vpack.c.b16 %v1181, %v1173
        %v1462 = vpack.c.b16 %v1182, %v1174
        %v1463 = vpack.c.b16 %v1183, %v1175
        %v1464 = vpack.c.b16 %v1184, %v1176
        %v1465 = vpack.c.b16 %v1185, %v1177
        %v1466 = vpack.c.b16 %v1194, %v1186
        %v1467 = vpack.c.b16 %v1195, %v1187
        %v1468 = vpack.c.b16 %v1196, %v1188
        %v1469 = vpack.c.b16 %v1197, %v1189
        %v1470 = vpack.c.b16 %v1198, %v1190
        %v1471 = vpack.c.b16 %v1199, %v1191
        %v1472 = vpack.c.b16 %v1200, %v1192
        %v1473 = vpack.c.b16 %v1201, %v1193
        %v1474 = vpack.c.b16 %v1210, %v1202
        %v1475 = vpack.c.b16 %v1211, %v1203
        %v1476 = vpack.c.b16 %v1212, %v1204
        %v1477 = vpack.c.b16 %v1213, %v1205
        %v1478 = vpack.c.b16 %v1214, %v1206
        %v1479 = vpack.c.b16 %v1215, %v1207
        %v1480 = vpack.c.b16 %v1216, %v1208
        %v1481 = vpack.c.b16 %v1217, %v1209
        %v1482 = vpack.c.b16 %v1226, %v1218
        %v1483 = vpack.c.b16 %v1227, %v1219
        %v1484 = vpack.c.b16 %v1228, %v1220
        %v1485 = vpack.c.b16 %v1229, %v1221
        %v1486 = vpack.c.b16 %v1230, %v1222
        %v1487 = vpack.c.b16 %v1231, %v1223
        %v1488 = vpack.c.b16 %v1232, %v1224
        %v1489 = vpack.c.b16 %v1233, %v1225
        %1746 = vmatprep.subr.bf16.mxu0 %v1291
        %1747 = vmatpush1.bf16.xpose.msra.mxu0 %v1290
        %1748 = vmatprep.subr.bf16.mxu0 %v1283
        %1749 = vmatpush1.bf16.xpose.msra.mxu0 %v1282
        %1750 = vmatprep.subr.bf16.mxu0 %v1275
        %1751 = vmatpush1.bf16.xpose.msra.mxu0 %v1274
        %1752 = vmatprep.subr.bf16.mxu0 %v1267
        %1753 = vmatpush1.bf16.xpose.msra.mxu0 %v1266
        %1754 = vmatprep.subr.bf16.mxu0 %v1259
        %1755 = vmatpush1.bf16.xpose.msra.mxu0 %v1258
        %1756 = vmatprep.subr.bf16.mxu0 %v1251
        %1757 = vmatpush1.bf16.xpose.msra.mxu0 %v1250
        %1758 = vmatprep.subr.bf16.mxu0 %v1243
        %1759 = vmatpush1.bf16.xpose.msra.mxu0 %v1242
        %1760 = vmatprep.subr.bf16.mxu0 %v1235
        %1761 = vmatpush1.bf16.xpose.msra.mxu0 %v1234
        %1762 = vmatprep.subr.bf16.mxu0 %v1355
        %1763 = vmatpush2.bf16.xpose.msra.mxu0 %v1354
        %1764 = vmatprep.subr.bf16.mxu0 %v1347
        %1765 = vmatpush2.bf16.xpose.msra.mxu0 %v1346
        %1766 = vmatprep.subr.bf16.mxu0 %v1339
        %1767 = vmatpush2.bf16.xpose.msra.mxu0 %v1338
        %1768 = vmatprep.subr.bf16.mxu0 %v1331
        %1769 = vmatpush2.bf16.xpose.msra.mxu0 %v1330
        %1770 = vmatprep.subr.bf16.mxu0 %v1323
        %1771 = vmatpush2.bf16.xpose.msra.mxu0 %v1322
        %1772 = vmatprep.subr.bf16.mxu0 %v1315
        %1773 = vmatpush2.bf16.xpose.msra.mxu0 %v1314
        %1774 = vmatprep.subr.bf16.mxu0 %v1307
        %1775 = vmatpush2.bf16.xpose.msra.mxu0 %v1306
        %1776 = vmatprep.subr.bf16.mxu0 %v1299
        %1777 = vmatpush2.bf16.xpose.msra.mxu0 %v1298
        %1778 = vmatprep.mubr.bf16.mxu0 %v451
        %1779 = vmatmul.mubr.bf16.gmra.mxu0 %v450
        %v1780 = vpop.f32.mrf.mxu0
        %v1781 = vadd.f32 0.0, %v1780
        %v1782 = vpop.f32.mrf.mxu0
        %v1783 = vadd.f32 0.0, %v1782
        %v1784 = vpop.f32.mrf.mxu0
        %v1785 = vpop.f32.mrf.mxu0
        %1786 = vdwg.mxu0
        %1787 = vmatprep.subr.bf16.mxu0 %v1293
        %1788 = vmatpush1.bf16.xpose.msra.mxu0 %v1292
        %1789 = vmatprep.subr.bf16.mxu0 %v1285
        %1790 = vmatpush1.bf16.xpose.msra.mxu0 %v1284
        %1791 = vmatprep.subr.bf16.mxu0 %v1277
        %1792 = vmatpush1.bf16.xpose.msra.mxu0 %v1276
        %1793 = vmatprep.subr.bf16.mxu0 %v1269
        %1794 = vmatpush1.bf16.xpose.msra.mxu0 %v1268
        %1795 = vmatprep.subr.bf16.mxu0 %v1261
        %1796 = vmatpush1.bf16.xpose.msra.mxu0 %v1260
        %1797 = vmatprep.subr.bf16.mxu0 %v1253
        %1798 = vmatpush1.bf16.xpose.msra.mxu0 %v1252
        %1799 = vmatprep.subr.bf16.mxu0 %v1245
        %1800 = vmatpush1.bf16.xpose.msra.mxu0 %v1244
        %1801 = vmatprep.subr.bf16.mxu0 %v1237
        %1802 = vmatpush1.bf16.xpose.msra.mxu0 %v1236
        %1803 = vmatprep.subr.bf16.mxu0 %v1357
        %1804 = vmatpush2.bf16.xpose.msra.mxu0 %v1356
        %1805 = vmatprep.subr.bf16.mxu0 %v1349
        %1806 = vmatpush2.bf16.xpose.msra.mxu0 %v1348
        %1807 = vmatprep.subr.bf16.mxu0 %v1341
        %1808 = vmatpush2.bf16.xpose.msra.mxu0 %v1340
        %1809 = vmatprep.subr.bf16.mxu0 %v1333
        %1810 = vmatpush2.bf16.xpose.msra.mxu0 %v1332
        %1811 = vmatprep.subr.bf16.mxu0 %v1325
        %1812 = vmatpush2.bf16.xpose.msra.mxu0 %v1324
        %1813 = vmatprep.subr.bf16.mxu0 %v1317
        %1814 = vmatpush2.bf16.xpose.msra.mxu0 %v1316
        %1815 = vmatprep.subr.bf16.mxu0 %v1309
        %1816 = vmatpush2.bf16.xpose.msra.mxu0 %v1308
        %1817 = vmatprep.subr.bf16.mxu0 %v1301
        %1818 = vmatpush2.bf16.xpose.msra.mxu0 %v1300
        %1819 = vmatprep.mubr.bf16.mxu0 %v453
        %1820 = vmatmul.mubr.bf16.gmra.mxu0 %v452
        %v1821 = vpop.f32.mrf.mxu0
        %v1822 = vadd.f32 %v1781, %v1821
        %v1823 = vpop.f32.mrf.mxu0
        %v1824 = vadd.f32 %v1783, %v1823
        %v1825 = vpop.f32.mrf.mxu0
        %v1826 = vpop.f32.mrf.mxu0
        %1827 = vdwg.mxu0
        %1828 = vmatprep.subr.bf16.mxu0 %v1295
        %1829 = vmatpush1.bf16.xpose.msra.mxu0 %v1294
        %1830 = vmatprep.subr.bf16.mxu0 %v1287
        %1831 = vmatpush1.bf16.xpose.msra.mxu0 %v1286
        %1832 = vmatprep.subr.bf16.mxu0 %v1279
        %1833 = vmatpush1.bf16.xpose.msra.mxu0 %v1278
        %1834 = vmatprep.subr.bf16.mxu0 %v1271
        %1835 = vmatpush1.bf16.xpose.msra.mxu0 %v1270
        %1836 = vmatprep.subr.bf16.mxu0 %v1263
        %1837 = vmatpush1.bf16.xpose.msra.mxu0 %v1262
        %1838 = vmatprep.subr.bf16.mxu0 %v1255
        %1839 = vmatpush1.bf16.xpose.msra.mxu0 %v1254
        %1840 = vmatprep.subr.bf16.mxu0 %v1247
        %1841 = vmatpush1.bf16.xpose.msra.mxu0 %v1246
        %1842 = vmatprep.subr.bf16.mxu0 %v1239
        %1843 = vmatpush1.bf16.xpose.msra.mxu0 %v1238
        %1844 = vmatprep.subr.bf16.mxu0 %v1359
        %1845 = vmatpush2.bf16.xpose.msra.mxu0 %v1358
        %1846 = vmatprep.subr.bf16.mxu0 %v1351
        %1847 = vmatpush2.bf16.xpose.msra.mxu0 %v1350
        %1848 = vmatprep.subr.bf16.mxu0 %v1343
        %1849 = vmatpush2.bf16.xpose.msra.mxu0 %v1342
        %1850 = vmatprep.subr.bf16.mxu0 %v1335
        %1851 = vmatpush2.bf16.xpose.msra.mxu0 %v1334
        %1852 = vmatprep.subr.bf16.mxu0 %v1327
        %1853 = vmatpush2.bf16.xpose.msra.mxu0 %v1326
        %1854 = vmatprep.subr.bf16.mxu0 %v1319
        %1855 = vmatpush2.bf16.xpose.msra.mxu0 %v1318
        %1856 = vmatprep.subr.bf16.mxu0 %v1311
        %1857 = vmatpush2.bf16.xpose.msra.mxu0 %v1310
        %1858 = vmatprep.subr.bf16.mxu0 %v1303
        %1859 = vmatpush2.bf16.xpose.msra.mxu0 %v1302
        %1860 = vmatprep.mubr.bf16.mxu0 %v455
        %1861 = vmatmul.mubr.bf16.gmra.mxu0 %v454
        %v1862 = vpop.f32.mrf.mxu0
        %v1863 = vadd.f32 %v1822, %v1862
        %v1864 = vpop.f32.mrf.mxu0
        %v1865 = vadd.f32 %v1824, %v1864
        %v1866 = vpop.f32.mrf.mxu0
        %v1867 = vpop.f32.mrf.mxu0
        %1868 = vdwg.mxu0
        %1869 = vmatprep.subr.bf16.mxu0 %v1297
        %1870 = vmatpush1.bf16.xpose.msra.mxu0 %v1296
        %1871 = vmatprep.subr.bf16.mxu0 %v1289
        %1872 = vmatpush1.bf16.xpose.msra.mxu0 %v1288
        %1873 = vmatprep.subr.bf16.mxu0 %v1281
        %1874 = vmatpush1.bf16.xpose.msra.mxu0 %v1280
        %1875 = vmatprep.subr.bf16.mxu0 %v1273
        %1876 = vmatpush1.bf16.xpose.msra.mxu0 %v1272
        %1877 = vmatprep.subr.bf16.mxu0 %v1265
        %1878 = vmatpush1.bf16.xpose.msra.mxu0 %v1264
        %1879 = vmatprep.subr.bf16.mxu0 %v1257
        %1880 = vmatpush1.bf16.xpose.msra.mxu0 %v1256
        %1881 = vmatprep.subr.bf16.mxu0 %v1249
        %1882 = vmatpush1.bf16.xpose.msra.mxu0 %v1248
        %1883 = vmatprep.subr.bf16.mxu0 %v1241
        %1884 = vmatpush1.bf16.xpose.msra.mxu0 %v1240
        %1885 = vmatprep.subr.bf16.mxu0 %v1361
        %1886 = vmatpush2.bf16.xpose.msra.mxu0 %v1360
        %1887 = vmatprep.subr.bf16.mxu0 %v1353
        %1888 = vmatpush2.bf16.xpose.msra.mxu0 %v1352
        %1889 = vmatprep.subr.bf16.mxu0 %v1345
        %1890 = vmatpush2.bf16.xpose.msra.mxu0 %v1344
        %1891 = vmatprep.subr.bf16.mxu0 %v1337
        %1892 = vmatpush2.bf16.xpose.msra.mxu0 %v1336
        %1893 = vmatprep.subr.bf16.mxu0 %v1329
        %1894 = vmatpush2.bf16.xpose.msra.mxu0 %v1328
        %1895 = vmatprep.subr.bf16.mxu0 %v1321
        %1896 = vmatpush2.bf16.xpose.msra.mxu0 %v1320
        %1897 = vmatprep.subr.bf16.mxu0 %v1313
        %1898 = vmatpush2.bf16.xpose.msra.mxu0 %v1312
        %1899 = vmatprep.subr.bf16.mxu0 %v1305
        %1900 = vmatpush2.bf16.xpose.msra.mxu0 %v1304
        %1901 = vmatprep.mubr.bf16.mxu0 %v457
        %1902 = vmatmul.mubr.bf16.gmra.mxu0 %v456
        %v1903 = vpop.f32.mrf.mxu0
        %v1904 = vadd.f32 %v1863, %v1903
        %v1905 = vpop.f32.mrf.mxu0
        %v1906 = vadd.f32 %v1865, %v1905
        %v1907 = vpop.f32.mrf.mxu0
        %v1908 = vpop.f32.mrf.mxu0
        %1909 = vdwg.mxu0
        %1910 = vmatprep.subr.bf16.mxu0 %v1419
        %1911 = vmatpush1.bf16.xpose.msra.mxu0 %v1418
        %1912 = vmatprep.subr.bf16.mxu0 %v1411
        %1913 = vmatpush1.bf16.xpose.msra.mxu0 %v1410
        %1914 = vmatprep.subr.bf16.mxu0 %v1403
        %1915 = vmatpush1.bf16.xpose.msra.mxu0 %v1402
        %1916 = vmatprep.subr.bf16.mxu0 %v1395
        %1917 = vmatpush1.bf16.xpose.msra.mxu0 %v1394
        %1918 = vmatprep.subr.bf16.mxu0 %v1387
        %1919 = vmatpush1.bf16.xpose.msra.mxu0 %v1386
        %1920 = vmatprep.subr.bf16.mxu0 %v1379
        %1921 = vmatpush1.bf16.xpose.msra.mxu0 %v1378
        %1922 = vmatprep.subr.bf16.mxu0 %v1371
        %1923 = vmatpush1.bf16.xpose.msra.mxu0 %v1370
        %1924 = vmatprep.subr.bf16.mxu0 %v1363
        %1925 = vmatpush1.bf16.xpose.msra.mxu0 %v1362
        %1926 = vmatprep.subr.bf16.mxu0 %v1483
        %1927 = vmatpush2.bf16.xpose.msra.mxu0 %v1482
        %1928 = vmatprep.subr.bf16.mxu0 %v1475
        %1929 = vmatpush2.bf16.xpose.msra.mxu0 %v1474
        %1930 = vmatprep.subr.bf16.mxu0 %v1467
        %1931 = vmatpush2.bf16.xpose.msra.mxu0 %v1466
        %1932 = vmatprep.subr.bf16.mxu0 %v1459
        %1933 = vmatpush2.bf16.xpose.msra.mxu0 %v1458
        %1934 = vmatprep.subr.bf16.mxu0 %v1451
        %1935 = vmatpush2.bf16.xpose.msra.mxu0 %v1450
        %1936 = vmatprep.subr.bf16.mxu0 %v1443
        %1937 = vmatpush2.bf16.xpose.msra.mxu0 %v1442
        %1938 = vmatprep.subr.bf16.mxu0 %v1435
        %1939 = vmatpush2.bf16.xpose.msra.mxu0 %v1434
        %1940 = vmatprep.subr.bf16.mxu0 %v1427
        %1941 = vmatpush2.bf16.xpose.msra.mxu0 %v1426
        %1942 = vmatprep.mubr.bf16.mxu0 %v451
        %1943 = vmatmul.mubr.bf16.gmra.mxu0 %v450
        %v1944 = vpop.f32.mrf.mxu0
        %v1945 = vadd.f32 0.0, %v1944
        %v1946 = vpop.f32.mrf.mxu0
        %v1947 = vadd.f32 0.0, %v1946
        %v1948 = vpop.f32.mrf.mxu0
        %v1949 = vpop.f32.mrf.mxu0
        %1950 = vdwg.mxu0
        %1951 = vmatprep.subr.bf16.mxu0 %v1421
        %1952 = vmatpush1.bf16.xpose.msra.mxu0 %v1420
        %1953 = vmatprep.subr.bf16.mxu0 %v1413
        %1954 = vmatpush1.bf16.xpose.msra.mxu0 %v1412
        %1955 = vmatprep.subr.bf16.mxu0 %v1405
        %1956 = vmatpush1.bf16.xpose.msra.mxu0 %v1404
        %1957 = vmatprep.subr.bf16.mxu0 %v1397
        %1958 = vmatpush1.bf16.xpose.msra.mxu0 %v1396
        %1959 = vmatprep.subr.bf16.mxu0 %v1389
        %1960 = vmatpush1.bf16.xpose.msra.mxu0 %v1388
        %1961 = vmatprep.subr.bf16.mxu0 %v1381
        %1962 = vmatpush1.bf16.xpose.msra.mxu0 %v1380
        %1963 = vmatprep.subr.bf16.mxu0 %v1373
        %1964 = vmatpush1.bf16.xpose.msra.mxu0 %v1372
        %1965 = vmatprep.subr.bf16.mxu0 %v1365
        %1966 = vmatpush1.bf16.xpose.msra.mxu0 %v1364
        %1967 = vmatprep.subr.bf16.mxu0 %v1485
        %1968 = vmatpush2.bf16.xpose.msra.mxu0 %v1484
        %1969 = vmatprep.subr.bf16.mxu0 %v1477
        %1970 = vmatpush2.bf16.xpose.msra.mxu0 %v1476
        %1971 = vmatprep.subr.bf16.mxu0 %v1469
        %1972 = vmatpush2.bf16.xpose.msra.mxu0 %v1468
        %1973 = vmatprep.subr.bf16.mxu0 %v1461
        %1974 = vmatpush2.bf16.xpose.msra.mxu0 %v1460
        %1975 = vmatprep.subr.bf16.mxu0 %v1453
        %1976 = vmatpush2.bf16.xpose.msra.mxu0 %v1452
        %1977 = vmatprep.subr.bf16.mxu0 %v1445
        %1978 = vmatpush2.bf16.xpose.msra.mxu0 %v1444
        %1979 = vmatprep.subr.bf16.mxu0 %v1437
        %1980 = vmatpush2.bf16.xpose.msra.mxu0 %v1436
        %1981 = vmatprep.subr.bf16.mxu0 %v1429
        %1982 = vmatpush2.bf16.xpose.msra.mxu0 %v1428
        %1983 = vmatprep.mubr.bf16.mxu0 %v453
        %1984 = vmatmul.mubr.bf16.gmra.mxu0 %v452
        %v1985 = vpop.f32.mrf.mxu0
        %v1986 = vadd.f32 %v1945, %v1985
        %v1987 = vpop.f32.mrf.mxu0
        %v1988 = vadd.f32 %v1947, %v1987
        %v1989 = vpop.f32.mrf.mxu0
        %v1990 = vpop.f32.mrf.mxu0
        %1991 = vdwg.mxu0
        %1992 = vmatprep.subr.bf16.mxu0 %v1423
        %1993 = vmatpush1.bf16.xpose.msra.mxu0 %v1422
        %1994 = vmatprep.subr.bf16.mxu0 %v1415
        %1995 = vmatpush1.bf16.xpose.msra.mxu0 %v1414
        %1996 = vmatprep.subr.bf16.mxu0 %v1407
        %1997 = vmatpush1.bf16.xpose.msra.mxu0 %v1406
        %1998 = vmatprep.subr.bf16.mxu0 %v1399
        %1999 = vmatpush1.bf16.xpose.msra.mxu0 %v1398
        %2000 = vmatprep.subr.bf16.mxu0 %v1391
        %2001 = vmatpush1.bf16.xpose.msra.mxu0 %v1390
        %2002 = vmatprep.subr.bf16.mxu0 %v1383
        %2003 = vmatpush1.bf16.xpose.msra.mxu0 %v1382
        %2004 = vmatprep.subr.bf16.mxu0 %v1375
        %2005 = vmatpush1.bf16.xpose.msra.mxu0 %v1374
        %2006 = vmatprep.subr.bf16.mxu0 %v1367
        %2007 = vmatpush1.bf16.xpose.msra.mxu0 %v1366
        %2008 = vmatprep.subr.bf16.mxu0 %v1487
        %2009 = vmatpush2.bf16.xpose.msra.mxu0 %v1486
        %2010 = vmatprep.subr.bf16.mxu0 %v1479
        %2011 = vmatpush2.bf16.xpose.msra.mxu0 %v1478
        %2012 = vmatprep.subr.bf16.mxu0 %v1471
        %2013 = vmatpush2.bf16.xpose.msra.mxu0 %v1470
        %2014 = vmatprep.subr.bf16.mxu0 %v1463
        %2015 = vmatpush2.bf16.xpose.msra.mxu0 %v1462
        %2016 = vmatprep.subr.bf16.mxu0 %v1455
        %2017 = vmatpush2.bf16.xpose.msra.mxu0 %v1454
        %2018 = vmatprep.subr.bf16.mxu0 %v1447
        %2019 = vmatpush2.bf16.xpose.msra.mxu0 %v1446
        %2020 = vmatprep.subr.bf16.mxu0 %v1439
        %2021 = vmatpush2.bf16.xpose.msra.mxu0 %v1438
        %2022 = vmatprep.subr.bf16.mxu0 %v1431
        %2023 = vmatpush2.bf16.xpose.msra.mxu0 %v1430
        %2024 = vmatprep.mubr.bf16.mxu0 %v455
        %2025 = vmatmul.mubr.bf16.gmra.mxu0 %v454
        %v2026 = vpop.f32.mrf.mxu0
        %v2027 = vadd.f32 %v1986, %v2026
        %v2028 = vpop.f32.mrf.mxu0
        %v2029 = vadd.f32 %v1988, %v2028
        %v2030 = vpop.f32.mrf.mxu0
        %v2031 = vpop.f32.mrf.mxu0
        %2032 = vdwg.mxu0
        %2033 = vmatprep.subr.bf16.mxu0 %v1425
        %2034 = vmatpush1.bf16.xpose.msra.mxu0 %v1424
        %2035 = vmatprep.subr.bf16.mxu0 %v1417
        %2036 = vmatpush1.bf16.xpose.msra.mxu0 %v1416
        %2037 = vmatprep.subr.bf16.mxu0 %v1409
        %2038 = vmatpush1.bf16.xpose.msra.mxu0 %v1408
        %2039 = vmatprep.subr.bf16.mxu0 %v1401
        %2040 = vmatpush1.bf16.xpose.msra.mxu0 %v1400
        %2041 = vmatprep.subr.bf16.mxu0 %v1393
        %2042 = vmatpush1.bf16.xpose.msra.mxu0 %v1392
        %2043 = vmatprep.subr.bf16.mxu0 %v1385
        %2044 = vmatpush1.bf16.xpose.msra.mxu0 %v1384
        %2045 = vmatprep.subr.bf16.mxu0 %v1377
        %2046 = vmatpush1.bf16.xpose.msra.mxu0 %v1376
        %2047 = vmatprep.subr.bf16.mxu0 %v1369
        %2048 = vmatpush1.bf16.xpose.msra.mxu0 %v1368
        %2049 = vmatprep.subr.bf16.mxu0 %v1489
        %2050 = vmatpush2.bf16.xpose.msra.mxu0 %v1488
        %2051 = vmatprep.subr.bf16.mxu0 %v1481
        %2052 = vmatpush2.bf16.xpose.msra.mxu0 %v1480
        %2053 = vmatprep.subr.bf16.mxu0 %v1473
        %2054 = vmatpush2.bf16.xpose.msra.mxu0 %v1472
        %2055 = vmatprep.subr.bf16.mxu0 %v1465
        %2056 = vmatpush2.bf16.xpose.msra.mxu0 %v1464
        %2057 = vmatprep.subr.bf16.mxu0 %v1457
        %2058 = vmatpush2.bf16.xpose.msra.mxu0 %v1456
        %2059 = vmatprep.subr.bf16.mxu0 %v1449
        %2060 = vmatpush2.bf16.xpose.msra.mxu0 %v1448
        %2061 = vmatprep.subr.bf16.mxu0 %v1441
        %2062 = vmatpush2.bf16.xpose.msra.mxu0 %v1440
        %2063 = vmatprep.subr.bf16.mxu0 %v1433
        %2064 = vmatpush2.bf16.xpose.msra.mxu0 %v1432
        %2065 = vmatprep.mubr.bf16.mxu0 %v457
        %2066 = vmatmul.mubr.bf16.gmra.mxu0 %v456
        %v2067 = vpop.f32.mrf.mxu0
        %v2068 = vadd.f32 %v2027, %v2067
        %v2069 = vpop.f32.mrf.mxu0
        %v2070 = vadd.f32 %v2029, %v2069
        %v2071 = vpop.f32.mrf.mxu0
        %v2072 = vpop.f32.mrf.mxu0
        %2073 = vdwg.mxu0
        %2074 = vst [vmem:[%s175] sm:$0xff] %v1904
        %2075 = vst [vmem:[%s175 + $0x8] sm:$0xff] %v1906
        %2076 = vst [vmem:[%s175 + $0x10] sm:$0xff] %v2068
        %2077 = vst [vmem:[%s175 + $0x18] sm:$0xff] %v2070
        %s2078 = sand.u32 %s75, 1
        %s2079 = scalar_lea.sflag [#allocation4], %s2078
        %s2080 = sand.u32 %s75, 1
        %s2081 = smul.addr %s2080, 32
        %s2082 = scalar_lea.vmem [#allocation7], %s2081
        // Predicated region
        $region37: #{tpu_custom_call.1} parent=27 // pred_check
          %p2083 = pneg %p85
        $region38: #{tpu_custom_call.1} parent=27 // pred_check_branch
          %2085 = sbr.rel (%p2083) target = $region40
        $region39: #{tpu_custom_call.1} parent=27 // pred_region
          %s2086 = smul.u32 4, %s20
          %s2088 = ssub.s32 512, 512
          %2089 = vsyncadd %s2079, %s2088
          %s2090 = smul.addr %s2086, 128
          %s2091 = scalar_lea.hbm %s2, %s2090
          %s2093 = sshll.u32 %s2082, 4
          %s2094 = int_to_ptr.vmem [resolvable:$true] %s2093
          %2096 = dma.vmem_to_hbm [thread:$0]  %s2094, 512, %s2091, %s2079
        $region40: #{tpu_custom_call.1} parent=27 // pred_fallthru
          _
      $region28: #{tpu_custom_call.1} parent=5 // pred_fallthru
        _
      %p2097 = scmp.le.s32.totalorder 2, %s15
      // Predicated region
      $region41: #{tpu_custom_call.1} parent=5 // pred_check
        %p2098 = pneg %p2097
      $region42: #{tpu_custom_call.1} parent=5 // pred_check_branch
        %2100 = sbr.rel (%p2098) target = $region44
      $region43: #{tpu_custom_call.1} parent=5 // pred_region
        %s2101 = ssub.s32 %s15, 2
        // Predicated region
        $region45: #{tpu_custom_call.1} parent=43 // pred_check
          %p2102 = pneg %p91
        $region46: #{tpu_custom_call.1} parent=43 // pred_check_branch
          %2104 = sbr.rel (%p2102) target = $region48
        $region47: #{tpu_custom_call.1} parent=43 // pred_region
          %s2105 = sand.u32 %s76, 1
          %s2106 = scalar_lea.sflag [#allocation4], %s2105
          %s2107 = sand.u32 %s76, 1
          %s2108 = smul.addr %s2107, 32
          %s2109 = scalar_lea.vmem [#allocation7], %s2108
          %2110 = dma.done %s2106, 512
        $region48: #{tpu_custom_call.1} parent=43 // pred_fallthru
          _
      $region44: #{tpu_custom_call.1} parent=5 // pred_fallthru
        _
    $region6: #{tpu_custom_call.1} parent=1 // loop_footer
      %s19 = sadd.s32 1, %s15
    $region7: #{tpu_custom_call.1} parent=1 // loop_footer_branch
      %14 = sbr.rel target = $region3
    $region8: #{tpu_custom_call.1} parent=1 // loop_exit
      _
    %2111 = vsyncpa [#allocation3], 1
    %s2112 = scalar_lea.sflag [#allocation3], 1
    %2113 = vsyncpa %s2112, 1
    %2114 = vsyncpa [#allocation6], 1
    %s2115 = scalar_lea.sflag [#allocation6], 1
    %2116 = vsyncpa %s2115, 1
    %2117 = vsyncpa [#allocation4], 1
    %s2118 = scalar_lea.sflag [#allocation4], 1
    %2119 = vsyncpa %s2118, 1

</llo_original>
